<compile_context>
chip_gen: v7x
topology: tpu7x:2x2x1
jax: 0.10.0
libtpu: 0.0.40
codegen_flags: <defaults>
</compile_context>

<pallas_src>
import functools

import jax
import jax.numpy as jnp
from jax import lax
from jax.experimental import pallas as pl
from jax.experimental.pallas import tpu as pltpu


def _round_up(x, m):
    return (x + m - 1) // m * m


def _t5_cross_attn_kernel(h_ref, kv_ref, wq_ref, wkv_ref, wo_ref, lnw_ref, out_ref,
                          q_scr, kvp_scr, ctx_scr,
                          *, n_heads, d_kv, d_model, eps, compute_dtype):
    inner = n_heads * d_kv
    cdt = compute_dtype

    h = h_ref[0]                                    # (tq, d_pad), input dtype
    h32 = h.astype(jnp.float32)

    # ---- T5LayerNorm (RMS): f32 statistics over the REAL d_model.  Padded
    # feature columns are zero, so the sum only sees real features. ----
    var = jnp.sum(h32 * h32, axis=-1, keepdims=True) * (1.0 / d_model)
    normed = (h32 * lax.rsqrt(var + eps)).astype(cdt) * lnw_ref[...].astype(cdt)

    # ---- Fused K|V projection: depends only on the batch index, so compute it
    # once per batch element.  The row-tile axis is the inner "arbitrary" grid
    # axis and scratch persists across grid steps, so later row tiles of the
    # same batch element reuse this result.  Single full-width MXU matmul. ----
    @pl.when(pl.program_id(1) == 0)
    def _():
        kv = kv_ref[0].astype(cdt)                  # (Sk, d_pad)
        kvp_scr[...] = jnp.dot(kv, wkv_ref[...],
                               preferred_element_type=jnp.float32).astype(cdt)

    # ---- Q projection (full-width matmul), staged through VMEM scratch so the
    # per-head attention below reads dk-wide sub-tiles from memory instead of
    # lane-slicing live vregs (keeps vreg pressure flat for large n_heads). ----
    q_scr[...] = jnp.dot(normed, wq_ref[...],
                         preferred_element_type=jnp.float32).astype(cdt)

    # ---- Per-head attention.  T5 applies NO 1/sqrt(d_kv) scaling and the
    # position bias is identically zero here (no relative bias, no mask).
    # Softmax math stays in f32. ----
    for hh in range(n_heads):                       # static: n_heads is a Python int
        q_h = q_scr[:, hh * d_kv:(hh + 1) * d_kv]                    # (tq, dk)
        k_h = kvp_scr[:, hh * d_kv:(hh + 1) * d_kv]                  # (Sk, dk)
        v_h = kvp_scr[:, inner + hh * d_kv:inner + (hh + 1) * d_kv]  # (Sk, dk)
        s = jnp.dot(q_h, k_h.T, preferred_element_type=jnp.float32)  # (tq, Sk)
        m = jnp.max(s, axis=-1, keepdims=True)
        p = jnp.exp(s - m)
        p = p * pl.reciprocal(jnp.sum(p, axis=-1, keepdims=True), approx=True)
        ctx_scr[:, hh * d_kv:(hh + 1) * d_kv] = jnp.dot(
            p.astype(cdt), v_h, preferred_element_type=jnp.float32).astype(cdt)

    # ---- Output projection (one full-width matmul over all heads) + residual.
    # Reuse the already-loaded `h` for the residual; the d_pad output is
    # lane-dense (multiple of 128). ----
    attn = jnp.dot(ctx_scr[...], wo_ref[...], preferred_element_type=jnp.float32)
    out_ref[0] = h + attn.astype(h.dtype)
    # TODO(synk): for very long key/value sequences (v7x: 64 MiB VMEM) tile Sk on
    # an extra "arbitrary" grid axis with flash-style online softmax instead of
    # holding the whole K|V projection in VMEM.


def t5_layer_cross_attention(hidden_states, key_value_states, params,
                             n_heads, d_kv, eps=1e-6, block_q=256,
                             vmem_limit_bytes=48 * 1024 * 1024):
    """T5LayerCrossAttention forward.

    Returns (layer_output, present_key_value_state, position_bias) like the
    PyTorch module (use_cache=False, no relative attention bias -> zeros).
    """
    B, Sq, D = hidden_states.shape
    Bk, Sk, Dk = key_value_states.shape
    assert Bk == B and Dk == D
    assert block_q % 8 == 0
    inner = n_heads * d_kv

    # Matmul operand dtype follows the weights (bf16 weights -> fast MXU path).
    compute_dtype = params["wq_t"].dtype

    # ---- Lane-dense padding (d_model -> multiple of 128) and row tiling ----
    d_pad = _round_up(D, 128)
    tq = min(block_q, _round_up(Sq, 8))
    sq_pad = _round_up(Sq, tq)

    h_p = jnp.pad(hidden_states, ((0, 0), (0, sq_pad - Sq), (0, d_pad - D)))
    kv_p = jnp.pad(key_value_states, ((0, 0), (0, 0), (0, d_pad - D)))

    wq = jnp.pad(params["wq_t"], ((0, d_pad - D), (0, 0)))                     # (Dp, inner)
    wkv = jnp.pad(jnp.concatenate([params["wk_t"], params["wv_t"]], axis=1),
                  ((0, d_pad - D), (0, 0)))                                    # (Dp, 2*inner)
    wo = jnp.pad(params["wo_t"], ((0, 0), (0, d_pad - D)))                     # (inner, Dp)
    lnw = jnp.pad(params["ln_w"], (0, d_pad - D)).reshape(1, d_pad)

    kernel = functools.partial(
        _t5_cross_attn_kernel, n_heads=n_heads, d_kv=d_kv, d_model=D, eps=eps,
        compute_dtype=compute_dtype)

    grid = (B, sq_pad // tq)

    out = pl.pallas_call(
        kernel,
        out_shape=jax.ShapeDtypeStruct((B, sq_pad, d_pad), hidden_states.dtype),
        grid_spec=pltpu.PrefetchScalarGridSpec(
            num_scalar_prefetch=0,
            grid=grid,
            in_specs=[
                pl.BlockSpec((1, tq, d_pad), lambda b, s: (b, s, 0)),    # hidden rows
                pl.BlockSpec((1, Sk, d_pad), lambda b, s: (b, 0, 0)),    # key/value states
                # Weight index_maps are constant -> DMA'd once.  (At production
                # sizes: bf16 weights + pipeline_mode=pl.Buffered(1) here.)
                pl.BlockSpec((d_pad, inner), lambda b, s: (0, 0)),       # Wq^T
                pl.BlockSpec((d_pad, 2 * inner), lambda b, s: (0, 0)),   # [Wk^T | Wv^T]
                pl.BlockSpec((inner, d_pad), lambda b, s: (0, 0)),       # Wo^T
                pl.BlockSpec((1, d_pad), lambda b, s: (0, 0)),           # layer-norm weight
            ],
            out_specs=pl.BlockSpec((1, tq, d_pad), lambda b, s: (b, s, 0)),
            scratch_shapes=[
                pltpu.VMEM((tq, inner), compute_dtype),        # q
                pltpu.VMEM((Sk, 2 * inner), compute_dtype),    # packed k|v
                pltpu.VMEM((tq, inner), compute_dtype),        # per-head context
            ]),
        compiler_params=pltpu.CompilerParams(
            dimension_semantics=("parallel", "arbitrary"),
            vmem_limit_bytes=vmem_limit_bytes),
    )(h_p, kv_p, wq, wkv, wo, lnw)

    layer_output = out[:, :Sq, :D]
    position_bias = jnp.zeros((1, n_heads, Sq, Sk), dtype=layer_output.dtype)
    present_key_value_state = None   # use_cache=False
    return layer_output, present_key_value_state, position_bias


def _reference(hidden_states, key_value_states, params, n_heads, d_kv, eps=1e-6):
    """Pure-JAX (f32, high-precision) reference mirroring the PyTorch forward."""
    B, Sq, D = hidden_states.shape
    _, Sk, _ = key_value_states.shape
    hp = lax.Precision.HIGHEST
    h32 = hidden_states.astype(jnp.float32)
    kv32 = key_value_states.astype(jnp.float32)
    var = jnp.mean(h32 * h32, axis=-1, keepdims=True)
    normed = h32 * lax.rsqrt(var + eps) * params["ln_w"].astype(jnp.float32)
    q = jnp.einsum("bsd,de->bse", normed, params["wq_t"].astype(jnp.float32), precision=hp)
    k = jnp.einsum("bsd,de->bse", kv32, params["wk_t"].astype(jnp.float32), precision=hp)
    v = jnp.einsum("bsd,de->bse", kv32, params["wv_t"].astype(jnp.float32), precision=hp)
    q = q.reshape(B, Sq, n_heads, d_kv)
    k = k.reshape(B, Sk, n_heads, d_kv)
    v = v.reshape(B, Sk, n_heads, d_kv)
    scores = jnp.einsum("bqhd,bkhd->bhqk", q, k, precision=hp)   # no 1/sqrt(d) in T5
    attn = jax.nn.softmax(scores, axis=-1)
    ctx = jnp.einsum("bhqk,bkhd->bqhd", attn, v, precision=hp).reshape(B, Sq, n_heads * d_kv)
    attn_out = jnp.einsum("bse,ed->bsd", ctx, params["wo_t"].astype(jnp.float32), precision=hp)
    return h32 + attn_out


if __name__ == "__main__":
    # Small config consistent with T5: d_model=32, n_heads=4, d_kv=8 -> inner_dim=32.
    B, Sq, Sk = 2, 16, 24
    d_model, n_heads, d_kv = 32, 4, 8
    inner = n_heads * d_kv

    key = jax.random.PRNGKey(0)
    k1, k2, k3, k4, k5, k6 = jax.random.split(key, 6)
    scale = 0.05
    params = {
        # Store W^T (in_features, out_features) so the kernel does x @ W^T directly.
        "wq_t": scale * jax.random.normal(k1, (d_model, inner), jnp.float32),
        "wk_t": scale * jax.random.normal(k2, (d_model, inner), jnp.float32),
        "wv_t": scale * jax.random.normal(k3, (d_model, inner), jnp.float32),
        "wo_t": scale * jax.random.normal(k4, (inner, d_model), jnp.float32),
        "ln_w": jnp.ones((d_model,), jnp.float32),   # T5LayerNorm init = ones
    }
    hidden_states = jax.random.normal(k5, (B, Sq, d_model), jnp.float32)
    key_value_states = jax.random.normal(k6, (B, Sk, d_model), jnp.float32)

    ref = _reference(hidden_states, key_value_states, params, n_heads, d_kv)

    # 1) f32 run, default row tiling.
    layer_out, present_kv, pos_bias = t5_layer_cross_attention(
        hidden_states, key_value_states, params, n_heads, d_kv)
    layer_out = jax.block_until_ready(layer_out)
    assert layer_out.shape == (B, Sq, d_model)
    assert jnp.allclose(layer_out, ref, atol=1e-3, rtol=1e-3), "f32 mismatch vs reference"
    assert present_kv is None
    assert pos_bias.shape == (1, n_heads, Sq, Sk)

    # 2) f32 run with a smaller row tile: exercises the (batch, row-tile) grid and
    #    the cached K|V projection across row tiles.
    layer_out_tiled, _, _ = t5_layer_cross_attention(
        hidden_states, key_value_states, params, n_heads, d_kv, block_q=8)
    layer_out_tiled = jax.block_until_ready(layer_out_tiled)
    assert jnp.allclose(layer_out_tiled, ref, atol=1e-3, rtol=1e-3), "tiled mismatch vs reference"

    # 3) bf16 weights + activations -> fast MXU path (f32 accumulation in-kernel).
    params_bf16 = jax.tree_util.tree_map(lambda x: x.astype(jnp.bfloat16), params)
    layer_out_bf16, _, _ = t5_layer_cross_attention(
        hidden_states.astype(jnp.bfloat16), key_value_states.astype(jnp.bfloat16),
        params_bf16, n_heads, d_kv)
    layer_out_bf16 = jax.block_until_ready(layer_out_bf16)
    assert layer_out_bf16.dtype == jnp.bfloat16
    assert jnp.allclose(layer_out_bf16.astype(jnp.float32), ref, atol=8e-2, rtol=8e-2), \
        "bf16 mismatch vs reference"

    print("KERNEL_OK")
</pallas_src>

<mosaic_0001>
module attributes {stable_mosaic.version = 11 : i64} {
  func.func @_t5_cross_attn_kernel(%arg0: i32, %arg1: i32, %arg2: memref<1x16x128xf32, #tpu.memory_space<vmem>>, %arg3: memref<1x24x128xf32, #tpu.memory_space<vmem>>, %arg4: memref<128x32xf32, #tpu.memory_space<vmem>>, %arg5: memref<128x64xf32, #tpu.memory_space<vmem>>, %arg6: memref<32x128xf32, #tpu.memory_space<vmem>>, %arg7: memref<1x128xf32, #tpu.memory_space<vmem>>, %arg8: memref<1x16x128xf32, #tpu.memory_space<vmem>>, %arg9: memref<16x32xf32, #tpu.memory_space<vmem>>, %arg10: memref<24x64xf32, #tpu.memory_space<vmem>>, %arg11: memref<16x32xf32, #tpu.memory_space<vmem>>) attributes {dimension_semantics = [#tpu.dimension_semantics<parallel>, #tpu.dimension_semantics<arbitrary>], iteration_bounds = array<i64: 2, 1>, scalar_prefetch = 0 : i64, scratch_operands = 3 : i64, tpu.core_type = #tpu.core_type<tc>, window_params = [{transform_indices = @transform_0, window_bounds = array<i64: 1, 16, 128>}, {transform_indices = @transform_1, window_bounds = array<i64: 1, 24, 128>}, {pipeline_mode = #tpu.pipeline_mode<synchronous>, transform_indices = @transform_2, window_bounds = array<i64: 128, 32>}, {pipeline_mode = #tpu.pipeline_mode<synchronous>, transform_indices = @transform_3, window_bounds = array<i64: 128, 64>}, {pipeline_mode = #tpu.pipeline_mode<synchronous>, transform_indices = @transform_4, window_bounds = array<i64: 32, 128>}, {pipeline_mode = #tpu.pipeline_mode<synchronous>, transform_indices = @transform_5, window_bounds = array<i64: 1, 128>}, {transform_indices = @transform_6, window_bounds = array<i64: 1, 16, 128>}]} {
    %c0 = arith.constant 0 : index
    %c0_0 = arith.constant 0 : index
    %c0_1 = arith.constant 0 : index
    %0 = vector.load %arg2[%c0, %c0_0, %c0_1] : memref<1x16x128xf32, #tpu.memory_space<vmem>>, vector<1x16x128xf32>
    %1 = vector.shape_cast %0 : vector<1x16x128xf32> to vector<16x128xf32>
    %2 = arith.mulf %1, %1 : vector<16x128xf32>
    %cst = arith.constant dense<0.000000e+00> : vector<16xf32>
    %3 = vector.multi_reduction <add>, %2, %cst [1] : vector<16x128xf32> to vector<16xf32>
    %4 = vector.shape_cast %3 : vector<16xf32> to vector<16x1xf32>
    %cst_2 = arith.constant 3.125000e-02 : f32
    %5 = vector.broadcast %cst_2 : f32 to vector<16x1xf32>
    %6 = arith.mulf %4, %5 : vector<16x1xf32>
    %cst_3 = arith.constant 9.99999997E-7 : f32
    %7 = vector.broadcast %cst_3 : f32 to vector<16x1xf32>
    %8 = arith.addf %6, %7 : vector<16x1xf32>
    %9 = math.rsqrt %8 : vector<16x1xf32>
    %10 = vector.broadcast %9 : vector<16x1xf32> to vector<16x128xf32>
    %11 = arith.mulf %1, %10 : vector<16x128xf32>
    %c0_4 = arith.constant 0 : index
    %c0_5 = arith.constant 0 : index
    %12 = vector.load %arg7[%c0_4, %c0_5] : memref<1x128xf32, #tpu.memory_space<vmem>>, vector<1x128xf32>
    %13 = vector.broadcast %12 : vector<1x128xf32> to vector<16x128xf32>
    %14 = arith.mulf %11, %13 : vector<16x128xf32>
    %c0_i32 = arith.constant 0 : i32
    %15 = arith.cmpi eq, %arg1, %c0_i32 : i32
    %16 = arith.extui %15 : i1 to i32
    %c0_i32_6 = arith.constant 0 : i32
    %17 = arith.cmpi ne, %16, %c0_i32_6 : i32
    scf.if %17 {
      %c0_61 = arith.constant 0 : index
      %c0_62 = arith.constant 0 : index
      %c0_63 = arith.constant 0 : index
      %96 = vector.load %arg3[%c0_61, %c0_62, %c0_63] : memref<1x24x128xf32, #tpu.memory_space<vmem>>, vector<1x24x128xf32>
      %97 = vector.shape_cast %96 : vector<1x24x128xf32> to vector<24x128xf32>
      %c0_64 = arith.constant 0 : index
      %c0_65 = arith.constant 0 : index
      %98 = vector.load %arg5[%c0_64, %c0_65] : memref<128x64xf32, #tpu.memory_space<vmem>>, vector<128x64xf32>
      %cst_66 = arith.constant dense<0.000000e+00> : vector<24x64xf32>
      %99 = tpu.matmul %97, %98, %cst_66 {dimension_numbers = #tpu.dot_dimension_numbers<[1], [0], [0], [1], [0, 0, 1, 1], [], []>} : vector<24x128xf32>, vector<128x64xf32>, vector<24x64xf32> -> vector<24x64xf32>
      %c0_67 = arith.constant 0 : index
      %c0_68 = arith.constant 0 : index
      %100 = vector.load %arg10[%c0_67, %c0_68] : memref<24x64xf32, #tpu.memory_space<vmem>>, vector<24x64xf32>
      tpu.vector_store %arg10[%c0_67, %c0_68], %99 {strides = array<i32>} : memref<24x64xf32, #tpu.memory_space<vmem>>, vector<24x64xf32>,
    } else {
    }
    %c0_7 = arith.constant 0 : index
    %c0_8 = arith.constant 0 : index
    %18 = vector.load %arg4[%c0_7, %c0_8] : memref<128x32xf32, #tpu.memory_space<vmem>>, vector<128x32xf32>
    %cst_9 = arith.constant dense<0.000000e+00> : vector<16x32xf32>
    %19 = tpu.matmul %14, %18, %cst_9 {dimension_numbers = #tpu.dot_dimension_numbers<[1], [0], [0], [1], [0, 0, 1, 1], [], []>} : vector<16x128xf32>, vector<128x32xf32>, vector<16x32xf32> -> vector<16x32xf32>
    %c0_10 = arith.constant 0 : index
    %c0_11 = arith.constant 0 : index
    %20 = vector.load %arg9[%c0_10, %c0_11] : memref<16x32xf32, #tpu.memory_space<vmem>>, vector<16x32xf32>
    tpu.vector_store %arg9[%c0_10, %c0_11], %19 {strides = array<i32>} : memref<16x32xf32, #tpu.memory_space<vmem>>, vector<16x32xf32>,
    %c0_12 = arith.constant 0 : index
    %c0_13 = arith.constant 0 : index
    %21 = vector.load %arg9[%c0_12, %c0_13] : memref<16x32xf32, #tpu.memory_space<vmem>>, vector<16x8xf32>
    %c0_14 = arith.constant 0 : index
    %c0_15 = arith.constant 0 : index
    %22 = vector.load %arg10[%c0_14, %c0_15] : memref<24x64xf32, #tpu.memory_space<vmem>>, vector<24x8xf32>
    %c0_16 = arith.constant 0 : index
    %c32 = arith.constant 32 : index
    %23 = vector.load %arg10[%c0_16, %c32] : memref<24x64xf32, #tpu.memory_space<vmem>>, vector<24x8xf32>
    %24 = tpu.transpose %22, [1, 0] : vector<24x8xf32> -> vector<8x24xf32>
    %cst_17 = arith.constant dense<0.000000e+00> : vector<16x24xf32>
    %25 = tpu.matmul %21, %24, %cst_17 {dimension_numbers = #tpu.dot_dimension_numbers<[1], [0], [0], [1], [0, 0, 1, 1], [], []>} : vector<16x8xf32>, vector<8x24xf32>, vector<16x24xf32> -> vector<16x24xf32>
    %cst_18 = arith.constant dense<0xFF800000> : vector<16xf32>
    %26 = vector.multi_reduction <maximumf>, %25, %cst_18 [1] : vector<16x24xf32> to vector<16xf32>
    %27 = vector.shape_cast %26 : vector<16xf32> to vector<16x1xf32>
    %28 = vector.broadcast %27 : vector<16x1xf32> to vector<16x24xf32>
    %29 = arith.subf %25, %28 : vector<16x24xf32>
    %30 = math.exp %29 : vector<16x24xf32>
    %cst_19 = arith.constant dense<0.000000e+00> : vector<16xf32>
    %31 = vector.multi_reduction <add>, %30, %cst_19 [1] : vector<16x24xf32> to vector<16xf32>
    %32 = vector.shape_cast %31 : vector<16xf32> to vector<16x1xf32>
    %33 = tpu.reciprocal %32 {approx = true} : vector<16x1xf32> -> vector<16x1xf32>
    %34 = vector.broadcast %33 : vector<16x1xf32> to vector<16x24xf32>
    %35 = arith.mulf %30, %34 : vector<16x24xf32>
    %cst_20 = arith.constant dense<0.000000e+00> : vector<16x8xf32>
    %36 = tpu.matmul %35, %23, %cst_20 {dimension_numbers = #tpu.dot_dimension_numbers<[1], [0], [0], [1], [0, 0, 1, 1], [], []>} : vector<16x24xf32>, vector<24x8xf32>, vector<16x8xf32> -> vector<16x8xf32>
    %c0_21 = arith.constant 0 : index
    %c0_22 = arith.constant 0 : index
    %37 = vector.load %arg11[%c0_21, %c0_22] : memref<16x32xf32, #tpu.memory_space<vmem>>, vector<16x8xf32>
    tpu.vector_store %arg11[%c0_21, %c0_22], %36 {strides = array<i32>} : memref<16x32xf32, #tpu.memory_space<vmem>>, vector<16x8xf32>,
    %c0_23 = arith.constant 0 : index
    %c8 = arith.constant 8 : index
    %38 = vector.load %arg9[%c0_23, %c8] : memref<16x32xf32, #tpu.memory_space<vmem>>, vector<16x8xf32>
    %c0_24 = arith.constant 0 : index
    %c8_25 = arith.constant 8 : index
    %39 = vector.load %arg10[%c0_24, %c8_25] : memref<24x64xf32, #tpu.memory_space<vmem>>, vector<24x8xf32>
    %c0_26 = arith.constant 0 : index
    %c40 = arith.constant 40 : index
    %40 = vector.load %arg10[%c0_26, %c40] : memref<24x64xf32, #tpu.memory_space<vmem>>, vector<24x8xf32>
    %41 = tpu.transpose %39, [1, 0] : vector<24x8xf32> -> vector<8x24xf32>
    %cst_27 = arith.constant dense<0.000000e+00> : vector<16x24xf32>
    %42 = tpu.matmul %38, %41, %cst_27 {dimension_numbers = #tpu.dot_dimension_numbers<[1], [0], [0], [1], [0, 0, 1, 1], [], []>} : vector<16x8xf32>, vector<8x24xf32>, vector<16x24xf32> -> vector<16x24xf32>
    %cst_28 = arith.constant dense<0xFF800000> : vector<16xf32>
    %43 = vector.multi_reduction <maximumf>, %42, %cst_28 [1] : vector<16x24xf32> to vector<16xf32>
    %44 = vector.shape_cast %43 : vector<16xf32> to vector<16x1xf32>
    %45 = vector.broadcast %44 : vector<16x1xf32> to vector<16x24xf32>
    %46 = arith.subf %42, %45 : vector<16x24xf32>
    %47 = math.exp %46 : vector<16x24xf32>
    %cst_29 = arith.constant dense<0.000000e+00> : vector<16xf32>
    %48 = vector.multi_reduction <add>, %47, %cst_29 [1] : vector<16x24xf32> to vector<16xf32>
    %49 = vector.shape_cast %48 : vector<16xf32> to vector<16x1xf32>
    %50 = tpu.reciprocal %49 {approx = true} : vector<16x1xf32> -> vector<16x1xf32>
    %51 = vector.broadcast %50 : vector<16x1xf32> to vector<16x24xf32>
    %52 = arith.mulf %47, %51 : vector<16x24xf32>
    %cst_30 = arith.constant dense<0.000000e+00> : vector<16x8xf32>
    %53 = tpu.matmul %52, %40, %cst_30 {dimension_numbers = #tpu.dot_dimension_numbers<[1], [0], [0], [1], [0, 0, 1, 1], [], []>} : vector<16x24xf32>, vector<24x8xf32>, vector<16x8xf32> -> vector<16x8xf32>
    %c0_31 = arith.constant 0 : index
    %c8_32 = arith.constant 8 : index
    %54 = vector.load %arg11[%c0_31, %c8_32] : memref<16x32xf32, #tpu.memory_space<vmem>>, vector<16x8xf32>
    tpu.vector_store %arg11[%c0_31, %c8_32], %53 {strides = array<i32>} : memref<16x32xf32, #tpu.memory_space<vmem>>, vector<16x8xf32>,
    %c0_33 = arith.constant 0 : index
    %c16 = arith.constant 16 : index
    %55 = vector.load %arg9[%c0_33, %c16] : memref<16x32xf32, #tpu.memory_space<vmem>>, vector<16x8xf32>
    %c0_34 = arith.constant 0 : index
    %c16_35 = arith.constant 16 : index
    %56 = vector.load %arg10[%c0_34, %c16_35] : memref<24x64xf32, #tpu.memory_space<vmem>>, vector<24x8xf32>
    %c0_36 = arith.constant 0 : index
    %c48 = arith.constant 48 : index
    %57 = vector.load %arg10[%c0_36, %c48] : memref<24x64xf32, #tpu.memory_space<vmem>>, vector<24x8xf32>
    %58 = tpu.transpose %56, [1, 0] : vector<24x8xf32> -> vector<8x24xf32>
    %cst_37 = arith.constant dense<0.000000e+00> : vector<16x24xf32>
    %59 = tpu.matmul %55, %58, %cst_37 {dimension_numbers = #tpu.dot_dimension_numbers<[1], [0], [0], [1], [0, 0, 1, 1], [], []>} : vector<16x8xf32>, vector<8x24xf32>, vector<16x24xf32> -> vector<16x24xf32>
    %cst_38 = arith.constant dense<0xFF800000> : vector<16xf32>
    %60 = vector.multi_reduction <maximumf>, %59, %cst_38 [1] : vector<16x24xf32> to vector<16xf32>
    %61 = vector.shape_cast %60 : vector<16xf32> to vector<16x1xf32>
    %62 = vector.broadcast %61 : vector<16x1xf32> to vector<16x24xf32>
    %63 = arith.subf %59, %62 : vector<16x24xf32>
    %64 = math.exp %63 : vector<16x24xf32>
    %cst_39 = arith.constant dense<0.000000e+00> : vector<16xf32>
    %65 = vector.multi_reduction <add>, %64, %cst_39 [1] : vector<16x24xf32> to vector<16xf32>
    %66 = vector.shape_cast %65 : vector<16xf32> to vector<16x1xf32>
    %67 = tpu.reciprocal %66 {approx = true} : vector<16x1xf32> -> vector<16x1xf32>
    %68 = vector.broadcast %67 : vector<16x1xf32> to vector<16x24xf32>
    %69 = arith.mulf %64, %68 : vector<16x24xf32>
    %cst_40 = arith.constant dense<0.000000e+00> : vector<16x8xf32>
    %70 = tpu.matmul %69, %57, %cst_40 {dimension_numbers = #tpu.dot_dimension_numbers<[1], [0], [0], [1], [0, 0, 1, 1], [], []>} : vector<16x24xf32>, vector<24x8xf32>, vector<16x8xf32> -> vector<16x8xf32>
    %c0_41 = arith.constant 0 : index
    %c16_42 = arith.constant 16 : index
    %71 = vector.load %arg11[%c0_41, %c16_42] : memref<16x32xf32, #tpu.memory_space<vmem>>, vector<16x8xf32>
    tpu.vector_store %arg11[%c0_41, %c16_42], %70 {strides = array<i32>} : memref<16x32xf32, #tpu.memory_space<vmem>>, vector<16x8xf32>,
    %c0_43 = arith.constant 0 : index
    %c24 = arith.constant 24 : index
    %72 = vector.load %arg9[%c0_43, %c24] : memref<16x32xf32, #tpu.memory_space<vmem>>, vector<16x8xf32>
    %c0_44 = arith.constant 0 : index
    %c24_45 = arith.constant 24 : index
    %73 = vector.load %arg10[%c0_44, %c24_45] : memref<24x64xf32, #tpu.memory_space<vmem>>, vector<24x8xf32>
    %c0_46 = arith.constant 0 : index
    %c56 = arith.constant 56 : index
    %74 = vector.load %arg10[%c0_46, %c56] : memref<24x64xf32, #tpu.memory_space<vmem>>, vector<24x8xf32>
    %75 = tpu.transpose %73, [1, 0] : vector<24x8xf32> -> vector<8x24xf32>
    %cst_47 = arith.constant dense<0.000000e+00> : vector<16x24xf32>
    %76 = tpu.matmul %72, %75, %cst_47 {dimension_numbers = #tpu.dot_dimension_numbers<[1], [0], [0], [1], [0, 0, 1, 1], [], []>} : vector<16x8xf32>, vector<8x24xf32>, vector<16x24xf32> -> vector<16x24xf32>
    %cst_48 = arith.constant dense<0xFF800000> : vector<16xf32>
    %77 = vector.multi_reduction <maximumf>, %76, %cst_48 [1] : vector<16x24xf32> to vector<16xf32>
    %78 = vector.shape_cast %77 : vector<16xf32> to vector<16x1xf32>
    %79 = vector.broadcast %78 : vector<16x1xf32> to vector<16x24xf32>
    %80 = arith.subf %76, %79 : vector<16x24xf32>
    %81 = math.exp %80 : vector<16x24xf32>
    %cst_49 = arith.constant dense<0.000000e+00> : vector<16xf32>
    %82 = vector.multi_reduction <add>, %81, %cst_49 [1] : vector<16x24xf32> to vector<16xf32>
    %83 = vector.shape_cast %82 : vector<16xf32> to vector<16x1xf32>
    %84 = tpu.reciprocal %83 {approx = true} : vector<16x1xf32> -> vector<16x1xf32>
    %85 = vector.broadcast %84 : vector<16x1xf32> to vector<16x24xf32>
    %86 = arith.mulf %81, %85 : vector<16x24xf32>
    %cst_50 = arith.constant dense<0.000000e+00> : vector<16x8xf32>
    %87 = tpu.matmul %86, %74, %cst_50 {dimension_numbers = #tpu.dot_dimension_numbers<[1], [0], [0], [1], [0, 0, 1, 1], [], []>} : vector<16x24xf32>, vector<24x8xf32>, vector<16x8xf32> -> vector<16x8xf32>
    %c0_51 = arith.constant 0 : index
    %c24_52 = arith.constant 24 : index
    %88 = vector.load %arg11[%c0_51, %c24_52] : memref<16x32xf32, #tpu.memory_space<vmem>>, vector<16x8xf32>
    tpu.vector_store %arg11[%c0_51, %c24_52], %87 {strides = array<i32>} : memref<16x32xf32, #tpu.memory_space<vmem>>, vector<16x8xf32>,
    %c0_53 = arith.constant 0 : index
    %c0_54 = arith.constant 0 : index
    %89 = vector.load %arg11[%c0_53, %c0_54] : memref<16x32xf32, #tpu.memory_space<vmem>>, vector<16x32xf32>
    %c0_55 = arith.constant 0 : index
    %c0_56 = arith.constant 0 : index
    %90 = vector.load %arg6[%c0_55, %c0_56] : memref<32x128xf32, #tpu.memory_space<vmem>>, vector<32x128xf32>
    %cst_57 = arith.constant dense<0.000000e+00> : vector<16x128xf32>
    %91 = tpu.matmul %89, %90, %cst_57 {dimension_numbers = #tpu.dot_dimension_numbers<[1], [0], [0], [1], [0, 0, 1, 1], [], []>} : vector<16x32xf32>, vector<32x128xf32>, vector<16x128xf32> -> vector<16x128xf32>
    %92 = arith.addf %1, %91 : vector<16x128xf32>
    %c0_58 = arith.constant 0 : index
    %c0_59 = arith.constant 0 : index
    %c0_60 = arith.constant 0 : index
    %93 = vector.load %arg8[%c0_58, %c0_59, %c0_60] : memref<1x16x128xf32, #tpu.memory_space<vmem>>, vector<1x16x128xf32>
    %94 = vector.shape_cast %93 : vector<1x16x128xf32> to vector<16x128xf32>
    %95 = vector.shape_cast %92 : vector<16x128xf32> to vector<1x16x128xf32>
    tpu.vector_store %arg8[%c0_58, %c0_59, %c0_60], %95 {strides = array<i32>} : memref<1x16x128xf32, #tpu.memory_space<vmem>>, vector<1x16x128xf32>,
    return
  }
  func.func @transform_0(%arg0: i32, %arg1: i32) -> (i32, i32, i32) {
    %c0_i32 = arith.constant 0 : i32
    %c0_i32_0 = arith.constant 0 : i32
    return %arg0, %arg1, %c0_i32 : i32, i32, i32
  }
  func.func @transform_1(%arg0: i32, %arg1: i32) -> (i32, i32, i32) {
    %c0_i32 = arith.constant 0 : i32
    %c0_i32_0 = arith.constant 0 : i32
    %c0_i32_1 = arith.constant 0 : i32
    return %arg0, %c0_i32, %c0_i32_0 : i32, i32, i32
  }
  func.func @transform_2(%arg0: i32, %arg1: i32) -> (i32, i32) {
    %c0_i32 = arith.constant 0 : i32
    %c0_i32_0 = arith.constant 0 : i32
    %c0_i32_1 = arith.constant 0 : i32
    return %c0_i32, %c0_i32_0 : i32, i32
  }
  func.func @transform_3(%arg0: i32, %arg1: i32) -> (i32, i32) {
    %c0_i32 = arith.constant 0 : i32
    %c0_i32_0 = arith.constant 0 : i32
    %c0_i32_1 = arith.constant 0 : i32
    return %c0_i32, %c0_i32_0 : i32, i32
  }
  func.func @transform_4(%arg0: i32, %arg1: i32) -> (i32, i32) {
    %c0_i32 = arith.constant 0 : i32
    %c0_i32_0 = arith.constant 0 : i32
    %c0_i32_1 = arith.constant 0 : i32
    return %c0_i32, %c0_i32_0 : i32, i32
  }
  func.func @transform_5(%arg0: i32, %arg1: i32) -> (i32, i32) {
    %c0_i32 = arith.constant 0 : i32
    %c0_i32_0 = arith.constant 0 : i32
    %c0_i32_1 = arith.constant 0 : i32
    return %c0_i32, %c0_i32_0 : i32, i32
  }
  func.func @transform_6(%arg0: i32, %arg1: i32) -> (i32, i32, i32) {
    %c0_i32 = arith.constant 0 : i32
    %c0_i32_0 = arith.constant 0 : i32
    return %arg0, %arg1, %c0_i32 : i32, i32, i32
  }
}

</mosaic_0001>

<llo_original>
// kernel: tpu_custom_call.1
$region0: #{tpu_custom_call.1}
  #allocation0 [shape = 'u32[]', space=smem, size = 0x4, offset = 0x4, fixed_abs, tag = 'smem constant byte address 0x4 - core index']
  #allocation1 [shape = 'u32[144,128]{1,0:T(1,128)}', space=vmem, size = 0x12000, scoped, tag = 'internal scratch']
  #allocation2 [shape = 'f32[16,32]{1,0:T(8,128)}', space=vmem, size = 0x2000, scoped, tag = 'scratch operand']
  #allocation3 [shape = 'f32[24,64]{1,0:T(8,128)}', space=vmem, size = 0x3000, scoped, tag = 'scratch operand']
  #allocation4 [shape = 'f32[16,32]{1,0:T(8,128)}', space=vmem, size = 0x2000, scoped, tag = 'scratch operand']
  %s0 = inlined_call_operand.vmem [shape: f32[2,16,128], index: 0, kind: input, shape index: {}]
  %s1 = inlined_call_operand.vmem [shape: f32[2,24,128], index: 1, kind: input, shape index: {}]
  %s2 = inlined_call_operand.vmem [shape: f32[128,32], index: 2, kind: input, shape index: {}]
  %s3 = inlined_call_operand.vmem [shape: f32[128,64], index: 3, kind: input, shape index: {}]
  %s4 = inlined_call_operand.vmem [shape: f32[32,128], index: 4, kind: input, shape index: {}]
  %s5 = inlined_call_operand.vmem [shape: f32[1,128], index: 5, kind: input, shape index: {}]
  %s6 = inlined_call_operand.hbm [shape: f32[2,16,128], index: 6, kind: output, shape index: {}]
  %s7 = sld [smem:[#allocation0]]
  $region61: #{tpu_custom_call.1} parent=0
    _
  %s9 = ssub.s32 1, %s7
  %s10 = scalar_select 0, %s9, %s7
  $region1: #{tpu_custom_call.1} parent=0
    #allocation5 [shape = 'u8[16384]{0}', space=vmem, size = 0x4000, scoped, tag = 'output window, operand 0']
    #allocation6 [shape = 's32[2]{0}', space=sflag, size = 0x8, scoped, tag = 'scoped memory for tpu_custom_call.1']
    %11 = vsyncpa [#allocation6], 0
    %s12 = scalar_lea.sflag [#allocation6], 1
    %13 = vsyncpa %s12, 0
    loop: start=0, step=1, limit=4
    $region2: #{tpu_custom_call.1} parent=1 // loop_pre_header
      _
    $region3: #{tpu_custom_call.1} parent=1 // loop_header
      %s15 = sphi 0, %s19
      %p16 = scmp.ge.s32.totalorder %s15, 4
      %s22 = sphi 0, %s34
      %s23 = sphi 0, %s30
      %s24 = sphi 0, %s22
      %s25 = sphi 0, %s23
      %s26 = sphi 0, %s24
      %s27 = sphi 0, %s25
      %s39 = sphi 0, %s41
      %s42 = sphi 0, %s39
      %s43 = sphi 0, %s42
      %s59 = sphi 0, %s43
      %s65 = sphi 0, %s67
      %s68 = sphi 0, %s65
      %s69 = sphi 0, %s68
      %s85 = sphi 0, %s69
      %s89 = sphi 0, %s89
      %s91 = sphi 0, %s89
      %s92 = sphi 0, %s91
      %s106 = sphi 0, %s92
      %s110 = sphi 0, %s110
      %s112 = sphi 0, %s110
      %s113 = sphi 0, %s112
      %s127 = sphi 0, %s113
      %s131 = sphi 0, %s131
      %s133 = sphi 0, %s131
      %s134 = sphi 0, %s133
      %s148 = sphi 0, %s134
      %s152 = sphi 0, %s152
      %s154 = sphi 0, %s152
      %s155 = sphi 0, %s154
      %s169 = sphi 0, %s155
      %s177 = sphi 0, %s179
      %s180 = sphi 0, %s177
      %s181 = sphi 0, %s180
      %s197 = sphi 0, %s181
    $region4: #{tpu_custom_call.1} parent=1 // loop_header_branch
      %18 = sbr.rel (%p16) target = $region8
    $region5: #{tpu_custom_call.1} parent=1 // loop_body
      %s20 = ssub.s32 %s15, 1
      %s21 = ssub.s32 %s15, 2
      %s28 = sadd.s32 1, %s23
      %p29 = scmp.ge.s32.totalorder %s28, 1
      %s30 = scalar_select %p29, 0, %s28
      %s31 = sadd.s32 1, %s22
      %s32 = scalar_select %p29, %s31, %s22
      %p33 = scmp.ge.s32.totalorder %s32, 2
      %s34 = scalar_select %p33, 0, %s32
      %s35 = ssub.s32 %s22, %s34
      %s36 = ssub.s32 %s23, %s30
      %s37 = sor.u32 %s35, %s36
      %p38 = scmp.eq.s32.totalorder %s37, 0
      %s40 = sadd.s32 %s39, 1
      %s41 = scalar_select %p38, %s39, %s40
      %p44 = pneg %p38
      %p45 = scmp.eq.s32.totalorder %s15, 1
      %p46 = por %p44, %p45
      %p47 = scmp.ne.s32.totalorder %s39, %s42
      %p48 = scmp.eq.s32.totalorder %s15, 0
      %p49 = por %p47, %p48
      %p50 = scmp.ne.s32.totalorder %s39, %s42
      %p51 = scmp.eq.s32.totalorder %s20, 1
      %p52 = por %p50, %p51
      %p53 = scmp.ne.s32.totalorder %s42, %s43
      %p54 = scmp.eq.s32.totalorder %s20, 0
      %p55 = por %p53, %p54
      %p56 = scmp.ne.s32.totalorder %s42, %s43
      %p57 = scmp.eq.s32.totalorder %s21, 1
      %p58 = por %p56, %p57
      %p60 = scmp.ne.s32.totalorder %s43, %s59
      %p61 = scmp.eq.s32.totalorder %s21, 0
      %p62 = por %p60, %p61
      %s63 = ssub.s32 %s22, %s34
      %p64 = scmp.eq.s32.totalorder %s63, 0
      %s66 = sadd.s32 %s65, 1
      %s67 = scalar_select %p64, %s65, %s66
      %p70 = pneg %p64
      %p71 = scmp.eq.s32.totalorder %s15, 1
      %p72 = por %p70, %p71
      %p73 = scmp.ne.s32.totalorder %s65, %s68
      %p74 = scmp.eq.s32.totalorder %s15, 0
      %p75 = por %p73, %p74
      %p76 = scmp.ne.s32.totalorder %s65, %s68
      %p77 = scmp.eq.s32.totalorder %s20, 1
      %p78 = por %p76, %p77
      %p79 = scmp.ne.s32.totalorder %s68, %s69
      %p80 = scmp.eq.s32.totalorder %s20, 0
      %p81 = por %p79, %p80
      %p82 = scmp.ne.s32.totalorder %s68, %s69
      %p83 = scmp.eq.s32.totalorder %s21, 1
      %p84 = por %p82, %p83
      %p86 = scmp.ne.s32.totalorder %s69, %s85
      %p87 = scmp.eq.s32.totalorder %s21, 0
      %p88 = por %p86, %p87
      %s90 = sadd.s32 %s89, 1
      %p93 = scmp.eq.s32.totalorder %s15, 1
      %p94 = scmp.ne.s32.totalorder %s89, %s91
      %p95 = scmp.eq.s32.totalorder %s15, 0
      %p96 = por %p94, %p95
      %p97 = scmp.ne.s32.totalorder %s89, %s91
      %p98 = scmp.eq.s32.totalorder %s20, 1
      %p99 = por %p97, %p98
      %p100 = scmp.ne.s32.totalorder %s91, %s92
      %p101 = scmp.eq.s32.totalorder %s20, 0
      %p102 = por %p100, %p101
      %p103 = scmp.ne.s32.totalorder %s91, %s92
      %p104 = scmp.eq.s32.totalorder %s21, 1
      %p105 = por %p103, %p104
      %p107 = scmp.ne.s32.totalorder %s92, %s106
      %p108 = scmp.eq.s32.totalorder %s21, 0
      %p109 = por %p107, %p108
      %s111 = sadd.s32 %s110, 1
      %p114 = scmp.eq.s32.totalorder %s15, 1
      %p115 = scmp.ne.s32.totalorder %s110, %s112
      %p116 = scmp.eq.s32.totalorder %s15, 0
      %p117 = por %p115, %p116
      %p118 = scmp.ne.s32.totalorder %s110, %s112
      %p119 = scmp.eq.s32.totalorder %s20, 1
      %p120 = por %p118, %p119
      %p121 = scmp.ne.s32.totalorder %s112, %s113
      %p122 = scmp.eq.s32.totalorder %s20, 0
      %p123 = por %p121, %p122
      %p124 = scmp.ne.s32.totalorder %s112, %s113
      %p125 = scmp.eq.s32.totalorder %s21, 1
      %p126 = por %p124, %p125
      %p128 = scmp.ne.s32.totalorder %s113, %s127
      %p129 = scmp.eq.s32.totalorder %s21, 0
      %p130 = por %p128, %p129
      %s132 = sadd.s32 %s131, 1
      %p135 = scmp.eq.s32.totalorder %s15, 1
      %p136 = scmp.ne.s32.totalorder %s131, %s133
      %p137 = scmp.eq.s32.totalorder %s15, 0
      %p138 = por %p136, %p137
      %p139 = scmp.ne.s32.totalorder %s131, %s133
      %p140 = scmp.eq.s32.totalorder %s20, 1
      %p141 = por %p139, %p140
      %p142 = scmp.ne.s32.totalorder %s133, %s134
      %p143 = scmp.eq.s32.totalorder %s20, 0
      %p144 = por %p142, %p143
      %p145 = scmp.ne.s32.totalorder %s133, %s134
      %p146 = scmp.eq.s32.totalorder %s21, 1
      %p147 = por %p145, %p146
      %p149 = scmp.ne.s32.totalorder %s134, %s148
      %p150 = scmp.eq.s32.totalorder %s21, 0
      %p151 = por %p149, %p150
      %s153 = sadd.s32 %s152, 1
      %p156 = scmp.eq.s32.totalorder %s15, 1
      %p157 = scmp.ne.s32.totalorder %s152, %s154
      %p158 = scmp.eq.s32.totalorder %s15, 0
      %p159 = por %p157, %p158
      %p160 = scmp.ne.s32.totalorder %s152, %s154
      %p161 = scmp.eq.s32.totalorder %s20, 1
      %p162 = por %p160, %p161
      %p163 = scmp.ne.s32.totalorder %s154, %s155
      %p164 = scmp.eq.s32.totalorder %s20, 0
      %p165 = por %p163, %p164
      %p166 = scmp.ne.s32.totalorder %s154, %s155
      %p167 = scmp.eq.s32.totalorder %s21, 1
      %p168 = por %p166, %p167
      %p170 = scmp.ne.s32.totalorder %s155, %s169
      %p171 = scmp.eq.s32.totalorder %s21, 0
      %p172 = por %p170, %p171
      %s173 = ssub.s32 %s22, %s34
      %s174 = ssub.s32 %s23, %s30
      %s175 = sor.u32 %s173, %s174
      %p176 = scmp.eq.s32.totalorder %s175, 0
      %s178 = sadd.s32 %s177, 1
      %s179 = scalar_select %p176, %s177, %s178
      %p182 = pneg %p176
      %p183 = scmp.eq.s32.totalorder %s15, 1
      %p184 = por %p182, %p183
      %p185 = scmp.ne.s32.totalorder %s177, %s180
      %p186 = scmp.eq.s32.totalorder %s15, 0
      %p187 = por %p185, %p186
      %p188 = scmp.ne.s32.totalorder %s177, %s180
      %p189 = scmp.eq.s32.totalorder %s20, 1
      %p190 = por %p188, %p189
      %p191 = scmp.ne.s32.totalorder %s180, %s181
      %p192 = scmp.eq.s32.totalorder %s20, 0
      %p193 = por %p191, %p192
      %p194 = scmp.ne.s32.totalorder %s180, %s181
      %p195 = scmp.eq.s32.totalorder %s21, 1
      %p196 = por %p194, %p195
      %p198 = scmp.ne.s32.totalorder %s181, %s197
      %p199 = scmp.eq.s32.totalorder %s21, 0
      %p200 = por %p198, %p199
      %p201 = scmp.le.s32.totalorder 1, %s15
      %p202 = scmp.lt.s32.totalorder %s15, 3
      %p203 = pnand %p201, %p202
      %p204 = pneg %p203
      // Predicated region
      $region9: #{tpu_custom_call.1} parent=5 // pred_check
        _
      $region10: #{tpu_custom_call.1} parent=5 // pred_check_branch
        %206 = sbr.rel (%p203) target = $region12
      $region11: #{tpu_custom_call.1} parent=5 // pred_region
        %s207 = ssub.s32 %s15, 1
        // Predicated region
        $region13: #{tpu_custom_call.1} parent=11 // pred_check
          %p208 = pneg %p102
        $region14: #{tpu_custom_call.1} parent=11 // pred_check_branch
          %210 = sbr.rel (%p208) target = $region16
        $region15: #{tpu_custom_call.1} parent=11 // pred_region
          _
        $region16: #{tpu_custom_call.1} parent=11 // pred_fallthru
          _
        // Predicated region
        $region17: #{tpu_custom_call.1} parent=11 // pred_check
          %p211 = pneg %p123
        $region18: #{tpu_custom_call.1} parent=11 // pred_check_branch
          %213 = sbr.rel (%p211) target = $region20
        $region19: #{tpu_custom_call.1} parent=11 // pred_region
          _
        $region20: #{tpu_custom_call.1} parent=11 // pred_fallthru
          _
        // Predicated region
        $region21: #{tpu_custom_call.1} parent=11 // pred_check
          %p214 = pneg %p144
        $region22: #{tpu_custom_call.1} parent=11 // pred_check_branch
          %216 = sbr.rel (%p214) target = $region24
        $region23: #{tpu_custom_call.1} parent=11 // pred_region
          _
        $region24: #{tpu_custom_call.1} parent=11 // pred_fallthru
          _
        // Predicated region
        $region25: #{tpu_custom_call.1} parent=11 // pred_check
          %p217 = pneg %p165
        $region26: #{tpu_custom_call.1} parent=11 // pred_check_branch
          %219 = sbr.rel (%p217) target = $region28
        $region27: #{tpu_custom_call.1} parent=11 // pred_region
          _
        $region28: #{tpu_custom_call.1} parent=11 // pred_fallthru
          _
      $region12: #{tpu_custom_call.1} parent=5 // pred_fallthru
        _
      %p220 = scmp.lt.s32.totalorder %s15, 2
      // Predicated region
      $region29: #{tpu_custom_call.1} parent=5 // pred_check
        %p221 = pneg %p220
      $region30: #{tpu_custom_call.1} parent=5 // pred_check_branch
        %223 = sbr.rel (%p221) target = $region32
      $region31: #{tpu_custom_call.1} parent=5 // pred_region
        // Predicated region
        $region33: #{tpu_custom_call.1} parent=31 // pred_check
          %p224 = pneg %p49
        $region34: #{tpu_custom_call.1} parent=31 // pred_check_branch
          %226 = sbr.rel (%p224) target = $region36
        $region35: #{tpu_custom_call.1} parent=31 // pred_region
          %s227 = smul.u32 2, %s23
          %p228 = scmp.lt.s32.totalorder %s22, 1
          %s229 = scalar_select %p228, %s22, 1
          %p230 = scmp.lt.s32.totalorder %s227, 1
          %s231 = scalar_select %p230, %s227, 1
          %s232 = smul.addr %s229, 2
          %s233 = sadd.s32 %s231, %s232
          %s234 = smul.addr %s233, 8
          %s235 = scalar_lea.vmem %s0, %s234
          %s236 = smul.u32 2, %s23
        $region36: #{tpu_custom_call.1} parent=31 // pred_fallthru
          _
        // Predicated region
        $region37: #{tpu_custom_call.1} parent=31 // pred_check
          %p237 = pneg %p75
        $region38: #{tpu_custom_call.1} parent=31 // pred_check_branch
          %239 = sbr.rel (%p237) target = $region40
        $region39: #{tpu_custom_call.1} parent=31 // pred_region
          %p240 = scmp.lt.s32.totalorder %s22, 1
          %s241 = scalar_select %p240, %s22, 1
          %s242 = smul.addr %s241, 3
          %s243 = smul.addr %s242, 8
          %s244 = scalar_lea.vmem %s1, %s243
        $region40: #{tpu_custom_call.1} parent=31 // pred_fallthru
          _
      $region32: #{tpu_custom_call.1} parent=5 // pred_fallthru
        _
      %p245 = scmp.le.s32.totalorder 1, %s15
      %p246 = scmp.lt.s32.totalorder %s15, 3
      %p247 = pnand %p245, %p246
      %p248 = pneg %p247
      // Predicated region
      $region41: #{tpu_custom_call.1} parent=5 // pred_check
        _
      $region42: #{tpu_custom_call.1} parent=5 // pred_check_branch
        %250 = sbr.rel (%p247) target = $region44
      $region43: #{tpu_custom_call.1} parent=5 // pred_region
        %s251 = ssub.s32 %s15, 1
        %s252 = smul.u32 2, %s25
        %p253 = scmp.lt.s32.totalorder %s24, 1
        %s254 = scalar_select %p253, %s24, 1
        %p255 = scmp.lt.s32.totalorder %s252, 1
        %s256 = scalar_select %p255, %s252, 1
        %s257 = smul.addr %s254, 2
        %s258 = sadd.s32 %s256, %s257
        %s259 = smul.addr %s258, 8
        %s260 = scalar_lea.vmem %s0, %s259
        %p261 = pneg %p55
        %p262 = pneg %p52
        %p263 = scmp.lt.s32.totalorder %s24, 1
        %s264 = scalar_select %p263, %s24, 1
        %s265 = smul.addr %s264, 3
        %s266 = smul.addr %s265, 8
        %s267 = scalar_lea.vmem %s1, %s266
        %p268 = pneg %p81
        %p269 = pneg %p78
        %p270 = pneg %p102
        %p271 = pneg %p99
        %p272 = pneg %p123
        %p273 = pneg %p120
        %p274 = pneg %p144
        %p275 = pneg %p141
        %p276 = pneg %p165
        %p277 = pneg %p162
        %p278 = pneg %p193
        %p279 = pneg %p190
        %s280 = sand.u32 %s180, 1
        %s281 = scalar_lea.sflag [#allocation6], %s280
        %s282 = sand.u32 %s180, 1
        %s283 = smul.addr %s282, 16
        %s284 = scalar_lea.vmem [#allocation5], %s283
        %s285 = smul.u32 2, %s25
        %p286 = scmp.lt.s32.totalorder %s24, 1
        %s287 = scalar_select %p286, %s24, 1
        %p288 = scmp.lt.s32.totalorder %s285, 1
        %s289 = scalar_select %p288, %s285, 1
        %s290 = smul.addr %s287, 2
        %s291 = sadd.s32 %s289, %s290
        %s292 = smul.addr %s291, 8
        %s293 = scalar_lea.vmem %s0, %s292
        %s294 = smul.u32 2, %s25
        %p295 = scmp.lt.s32.totalorder %s24, 1
        %s296 = scalar_select %p295, %s24, 1
        %s297 = smul.addr %s296, 3
        %s298 = smul.addr %s297, 8
        %s299 = scalar_lea.vmem %s1, %s298
        %s300 = smul.u32 2, %s25
        %v301 = vld [vmem:[%s293] sm:$0xff]
        %v302 = vld [vmem:[%s293 + $0x8] sm:$0xff]
        %v303 = vmul.f32 %v301, %v301
        %v304 = vmul.f32 %v302, %v302
        %305 = vadd.xlane.f32.xlu0 %v303
        %v306 = vpop.xlane.xlu0 %305
        %307 = vadd.xlane.f32.xlu0 %v304
        %v308 = vpop.xlane.xlu0 %307
        %v309 = vmul.f32 %v306, 0.03125
        %v310 = vmul.f32 %v308, 0.03125
        %v311 = vadd.f32 %v309, 1e-06
        %v312 = vadd.f32 %v310, 1e-06
        %v313 = vrsqrt.pop %v311
        %v314 = vrsqrt.pop %v312
        %v315 = vmul.f32 %v301, %v313
        %v316 = vmul.f32 %v302, %v314
        %v317 = vld [vmem:[%s5] sm:$0x1]
        %v319 = vlaneseq
        %v320 = vshrl.u32 %v319, 7
        %v321 = vsub.s32 0, %v320
        %v322 = vrot.slane %v317, %v321
        %v324 = vmul.f32 %v315, %v322
        %v325 = vmul.f32 %v316, %v322
        %p326 = scmp.eq.s32.totalorder %s25, 0
        // Predicated region
        $region45: #{tpu_custom_call.1} parent=43 // pred_check
          %p327 = pneg %p326
        $region46: #{tpu_custom_call.1} parent=43 // pred_check_branch
          %329 = sbr.rel (%p327) target = $region48
        $region47: #{tpu_custom_call.1} parent=43 // pred_region
          %v330 = vld [vmem:[%s299] sm:$0xff]
          %v331 = vld [vmem:[%s299 + $0x8] sm:$0xff]
          %v332 = vld [vmem:[%s299 + $0x10] sm:$0xff]
          %v333 = vld [vmem:[%s3] sm:$0xff]
          %v334 = vld [vmem:[%s3 + $0x8] sm:$0xff]
          %v335 = vld [vmem:[%s3 + $0x10] sm:$0xff]
          %v336 = vld [vmem:[%s3 + $0x18] sm:$0xff]
          %v337 = vld [vmem:[%s3 + $0x20] sm:$0xff]
          %v338 = vld [vmem:[%s3 + $0x28] sm:$0xff]
          %v339 = vld [vmem:[%s3 + $0x30] sm:$0xff]
          %v340 = vld [vmem:[%s3 + $0x38] sm:$0xff]
          %v341 = vld [vmem:[%s3 + $0x40] sm:$0xff]
          %v342 = vld [vmem:[%s3 + $0x48] sm:$0xff]
          %v343 = vld [vmem:[%s3 + $0x50] sm:$0xff]
          %v344 = vld [vmem:[%s3 + $0x58] sm:$0xff]
          %v345 = vld [vmem:[%s3 + $0x60] sm:$0xff]
          %v346 = vld [vmem:[%s3 + $0x68] sm:$0xff]
          %v347 = vld [vmem:[%s3 + $0x70] sm:$0xff]
          %v348 = vld [vmem:[%s3 + $0x78] sm:$0xff]
          %349 = vmatprep.subr.mxu0 0.0
          %350 = vmatpush1.msra.mxu0 %v333
          %351 = vmatprep.subr.mxu0 0.0
          %352 = vmatpush1.msra.mxu0 %v334
          %353 = vmatprep.subr.mxu0 0.0
          %354 = vmatpush1.msra.mxu0 %v335
          %355 = vmatprep.subr.mxu0 0.0
          %356 = vmatpush1.msra.mxu0 %v336
          %357 = vmatprep.subr.mxu0 0.0
          %358 = vmatpush1.msra.mxu0 %v337
          %359 = vmatprep.subr.mxu0 0.0
          %360 = vmatpush1.msra.mxu0 %v338
          %361 = vmatprep.subr.mxu0 0.0
          %362 = vmatpush1.msra.mxu0 %v339
          %363 = vmatprep.subr.mxu0 0.0
          %364 = vmatpush1.msra.mxu0 %v340
          %365 = vmatprep.subr.mxu0 0.0
          %366 = vmatpush1.msra.mxu0 %v341
          %367 = vmatprep.subr.mxu0 0.0
          %368 = vmatpush1.msra.mxu0 %v342
          %369 = vmatprep.subr.mxu0 0.0
          %370 = vmatpush1.msra.mxu0 %v343
          %371 = vmatprep.subr.mxu0 0.0
          %372 = vmatpush1.msra.mxu0 %v344
          %373 = vmatprep.subr.mxu0 0.0
          %374 = vmatpush1.msra.mxu0 %v345
          %375 = vmatprep.subr.mxu0 0.0
          %376 = vmatpush1.msra.mxu0 %v346
          %377 = vmatprep.subr.mxu0 0.0
          %378 = vmatpush1.msra.mxu0 %v347
          %379 = vmatprep.subr.mxu0 0.0
          %380 = vmatpush1.msra.mxu0 %v348
          %381 = vmatprep.subr.mxu0 0.0
          %382 = vmatpush1.msra.mxu0 0.0
          %383 = vmatprep.subr.mxu0 0.0
          %384 = vmatpush1.msra.mxu0 0.0
          %385 = vmatprep.subr.mxu0 0.0
          %386 = vmatpush1.msra.mxu0 0.0
          %387 = vmatprep.subr.mxu0 0.0
          %388 = vmatpush1.msra.mxu0 0.0
          %389 = vmatprep.subr.mxu0 0.0
          %390 = vmatpush1.msra.mxu0 0.0
          %391 = vmatprep.subr.mxu0 0.0
          %392 = vmatpush1.msra.mxu0 0.0
          %393 = vmatprep.subr.mxu0 0.0
          %394 = vmatpush1.msra.mxu0 0.0
          %395 = vmatprep.subr.mxu0 0.0
          %396 = vmatpush1.msra.mxu0 0.0
          %397 = vmatprep.subr.mxu0 0.0
          %398 = vmatpush1.msra.mxu0 0.0
          %399 = vmatprep.subr.mxu0 0.0
          %400 = vmatpush1.msra.mxu0 0.0
          %401 = vmatprep.subr.mxu0 0.0
          %402 = vmatpush1.msra.mxu0 0.0
          %403 = vmatprep.subr.mxu0 0.0
          %404 = vmatpush1.msra.mxu0 0.0
          %405 = vmatprep.subr.mxu0 0.0
          %406 = vmatpush1.msra.mxu0 0.0
          %407 = vmatprep.subr.mxu0 0.0
          %408 = vmatpush1.msra.mxu0 0.0
          %409 = vmatprep.subr.mxu0 0.0
          %410 = vmatpush1.msra.mxu0 0.0
          %411 = vmatprep.subr.mxu0 0.0
          %412 = vmatpush1.msra.mxu0 0.0
          %413 = vmatprep.mubr.f32.mxu0 0.0
          %414 = vmatmul.mubr.f32.gmra.mrb[0].mxu0 %v330
          %v415 = vpop.f32.mrb[0].mxu0
          %v416 = vadd.f32 0.0, %v415
          %v417 = vpop.f32.mrb[0].mxu0
          %418 = vmatprep.mubr.f32.mxu0 0.0
          %419 = vmatmul.mubr.f32.gmra.mrb[0].mxu0 %v331
          %v420 = vpop.f32.mrb[0].mxu0
          %v421 = vadd.f32 0.0, %v420
          %v422 = vpop.f32.mrb[0].mxu0
          %423 = vmatprep.mubr.f32.mxu0 0.0
          %424 = vmatmul.mubr.f32.gmra.mrb[0].mxu0 %v332
          %v425 = vpop.f32.mrb[0].mxu0
          %v426 = vadd.f32 0.0, %v425
          %v427 = vpop.f32.mrb[0].mxu0
          %428 = vdwg.mxu0
          %vm429 = vcmask 523264
          %430 = vst.msk [vmem:[#allocation3] sm:$0xff] %vm429, %v416
          %431 = vst.msk [vmem:[#allocation3 + $0x8] sm:$0xff] %vm429, %v421
          %432 = vst.msk [vmem:[#allocation3 + $0x10] sm:$0xff] %vm429, %v426
        $region48: #{tpu_custom_call.1} parent=43 // pred_fallthru
          _
        %v433 = vld [vmem:[%s2] sm:$0xff]
        %v434 = vld [vmem:[%s2 + $0x8] sm:$0xff]
        %v435 = vld [vmem:[%s2 + $0x10] sm:$0xff]
        %v436 = vld [vmem:[%s2 + $0x18] sm:$0xff]
        %v437 = vld [vmem:[%s2 + $0x20] sm:$0xff]
        %v438 = vld [vmem:[%s2 + $0x28] sm:$0xff]
        %v439 = vld [vmem:[%s2 + $0x30] sm:$0xff]
        %v440 = vld [vmem:[%s2 + $0x38] sm:$0xff]
        %v441 = vld [vmem:[%s2 + $0x40] sm:$0xff]
        %v442 = vld [vmem:[%s2 + $0x48] sm:$0xff]
        %v443 = vld [vmem:[%s2 + $0x50] sm:$0xff]
        %v444 = vld [vmem:[%s2 + $0x58] sm:$0xff]
        %v445 = vld [vmem:[%s2 + $0x60] sm:$0xff]
        %v446 = vld [vmem:[%s2 + $0x68] sm:$0xff]
        %v447 = vld [vmem:[%s2 + $0x70] sm:$0xff]
        %v448 = vld [vmem:[%s2 + $0x78] sm:$0xff]
        %449 = vmatprep.subr.mxu0 0.0
        %450 = vmatpush1.msra.mxu0 %v433
        %451 = vmatprep.subr.mxu0 0.0
        %452 = vmatpush1.msra.mxu0 %v434
        %453 = vmatprep.subr.mxu0 0.0
        %454 = vmatpush1.msra.mxu0 %v435
        %455 = vmatprep.subr.mxu0 0.0
        %456 = vmatpush1.msra.mxu0 %v436
        %457 = vmatprep.subr.mxu0 0.0
        %458 = vmatpush1.msra.mxu0 %v437
        %459 = vmatprep.subr.mxu0 0.0
        %460 = vmatpush1.msra.mxu0 %v438
        %461 = vmatprep.subr.mxu0 0.0
        %462 = vmatpush1.msra.mxu0 %v439
        %463 = vmatprep.subr.mxu0 0.0
        %464 = vmatpush1.msra.mxu0 %v440
        %465 = vmatprep.subr.mxu0 0.0
        %466 = vmatpush1.msra.mxu0 %v441
        %467 = vmatprep.subr.mxu0 0.0
        %468 = vmatpush1.msra.mxu0 %v442
        %469 = vmatprep.subr.mxu0 0.0
        %470 = vmatpush1.msra.mxu0 %v443
        %471 = vmatprep.subr.mxu0 0.0
        %472 = vmatpush1.msra.mxu0 %v444
        %473 = vmatprep.subr.mxu0 0.0
        %474 = vmatpush1.msra.mxu0 %v445
        %475 = vmatprep.subr.mxu0 0.0
        %476 = vmatpush1.msra.mxu0 %v446
        %477 = vmatprep.subr.mxu0 0.0
        %478 = vmatpush1.msra.mxu0 %v447
        %479 = vmatprep.subr.mxu0 0.0
        %480 = vmatpush1.msra.mxu0 %v448
        %481 = vmatprep.subr.mxu0 0.0
        %482 = vmatpush1.msra.mxu0 0.0
        %483 = vmatprep.subr.mxu0 0.0
        %484 = vmatpush1.msra.mxu0 0.0
        %485 = vmatprep.subr.mxu0 0.0
        %486 = vmatpush1.msra.mxu0 0.0
        %487 = vmatprep.subr.mxu0 0.0
        %488 = vmatpush1.msra.mxu0 0.0
        %489 = vmatprep.subr.mxu0 0.0
        %490 = vmatpush1.msra.mxu0 0.0
        %491 = vmatprep.subr.mxu0 0.0
        %492 = vmatpush1.msra.mxu0 0.0
        %493 = vmatprep.subr.mxu0 0.0
        %494 = vmatpush1.msra.mxu0 0.0
        %495 = vmatprep.subr.mxu0 0.0
        %496 = vmatpush1.msra.mxu0 0.0
        %497 = vmatprep.subr.mxu0 0.0
        %498 = vmatpush1.msra.mxu0 0.0
        %499 = vmatprep.subr.mxu0 0.0
        %500 = vmatpush1.msra.mxu0 0.0
        %501 = vmatprep.subr.mxu0 0.0
        %502 = vmatpush1.msra.mxu0 0.0
        %503 = vmatprep.subr.mxu0 0.0
        %504 = vmatpush1.msra.mxu0 0.0
        %505 = vmatprep.subr.mxu0 0.0
        %506 = vmatpush1.msra.mxu0 0.0
        %507 = vmatprep.subr.mxu0 0.0
        %508 = vmatpush1.msra.mxu0 0.0
        %509 = vmatprep.subr.mxu0 0.0
        %510 = vmatpush1.msra.mxu0 0.0
        %511 = vmatprep.subr.mxu0 0.0
        %512 = vmatpush1.msra.mxu0 0.0
        %513 = vmatprep.mubr.f32.mxu0 0.0
        %514 = vmatmul.mubr.f32.gmra.mrb[0].mxu0 %v324
        %v515 = vpop.f32.mrb[0].mxu0
        %v516 = vadd.f32 0.0, %v515
        %v517 = vpop.f32.mrb[0].mxu0
        %518 = vmatprep.mubr.f32.mxu0 0.0
        %519 = vmatmul.mubr.f32.gmra.mrb[0].mxu0 %v325
        %v520 = vpop.f32.mrb[0].mxu0
        %v521 = vadd.f32 0.0, %v520
        %v522 = vpop.f32.mrb[0].mxu0
        %523 = vdwg.mxu0
        %vm524 = vcmask 261120
        %525 = vst.msk [vmem:[#allocation2] sm:$0xff] %vm524, %v516
        %526 = vst.msk [vmem:[#allocation2 + $0x8] sm:$0xff] %vm524, %v521
        %v527 = vld [vmem:[#allocation2] sm:$0xff]
        %v528 = vld [vmem:[#allocation2 + $0x8] sm:$0xff]
        %v529 = vld [vmem:[#allocation3] sm:$0xff]
        %v530 = vld [vmem:[#allocation3 + $0x8] sm:$0xff]
        %v531 = vld [vmem:[#allocation3 + $0x10] sm:$0xff]
        %vm532 = vcmask 64512
        %v534 = vsel %vm532, %v527, 0
        %v537 = vsel %vm532, %v528, 0
        %v540 = vsel %vm532, %v529, 0
        %v543 = vsel %vm532, %v530, 0
        %v546 = vsel %vm532, %v531, 0
        %548 = vmatprep.subr.mxu0 0.0
        %549 = vmatpush1.xpose.msra.mxu0 %v540
        %550 = vmatprep.subr.mxu0 0.0
        %551 = vmatpush1.xpose.msra.mxu0 %v543
        %552 = vmatprep.subr.mxu0 0.0
        %553 = vmatpush1.xpose.msra.mxu0 %v546
        %554 = vmatprep.subr.mxu0 0.0
        %555 = vmatpush1.xpose.msra.mxu0 0.0
        %556 = vmatprep.subr.mxu0 0.0
        %557 = vmatpush1.xpose.msra.mxu0 0.0
        %558 = vmatprep.subr.mxu0 0.0
        %559 = vmatpush1.xpose.msra.mxu0 0.0
        %560 = vmatprep.subr.mxu0 0.0
        %561 = vmatpush1.xpose.msra.mxu0 0.0
        %562 = vmatprep.subr.mxu0 0.0
        %563 = vmatpush1.xpose.msra.mxu0 0.0
        %564 = vmatprep.subr.mxu0 0.0
        %565 = vmatpush1.xpose.msra.mxu0 0.0
        %566 = vmatprep.subr.mxu0 0.0
        %567 = vmatpush1.xpose.msra.mxu0 0.0
        %568 = vmatprep.subr.mxu0 0.0
        %569 = vmatpush1.xpose.msra.mxu0 0.0
        %570 = vmatprep.subr.mxu0 0.0
        %571 = vmatpush1.xpose.msra.mxu0 0.0
        %572 = vmatprep.subr.mxu0 0.0
        %573 = vmatpush1.xpose.msra.mxu0 0.0
        %574 = vmatprep.subr.mxu0 0.0
        %575 = vmatpush1.xpose.msra.mxu0 0.0
        %576 = vmatprep.subr.mxu0 0.0
        %577 = vmatpush1.xpose.msra.mxu0 0.0
        %578 = vmatprep.subr.mxu0 0.0
        %579 = vmatpush1.xpose.msra.mxu0 0.0
        %580 = vmatprep.subr.mxu0 0.0
        %581 = vmatpush1.xpose.msra.mxu0 0.0
        %582 = vmatprep.subr.mxu0 0.0
        %583 = vmatpush1.xpose.msra.mxu0 0.0
        %584 = vmatprep.subr.mxu0 0.0
        %585 = vmatpush1.xpose.msra.mxu0 0.0
        %586 = vmatprep.subr.mxu0 0.0
        %587 = vmatpush1.xpose.msra.mxu0 0.0
        %588 = vmatprep.subr.mxu0 0.0
        %589 = vmatpush1.xpose.msra.mxu0 0.0
        %590 = vmatprep.subr.mxu0 0.0
        %591 = vmatpush1.xpose.msra.mxu0 0.0
        %592 = vmatprep.subr.mxu0 0.0
        %593 = vmatpush1.xpose.msra.mxu0 0.0
        %594 = vmatprep.subr.mxu0 0.0
        %595 = vmatpush1.xpose.msra.mxu0 0.0
        %596 = vmatprep.subr.mxu0 0.0
        %597 = vmatpush1.xpose.msra.mxu0 0.0
        %598 = vmatprep.subr.mxu0 0.0
        %599 = vmatpush1.xpose.msra.mxu0 0.0
        %600 = vmatprep.subr.mxu0 0.0
        %601 = vmatpush1.xpose.msra.mxu0 0.0
        %602 = vmatprep.subr.mxu0 0.0
        %603 = vmatpush1.xpose.msra.mxu0 0.0
        %604 = vmatprep.subr.mxu0 0.0
        %605 = vmatpush1.xpose.msra.mxu0 0.0
        %606 = vmatprep.subr.mxu0 0.0
        %607 = vmatpush1.xpose.msra.mxu0 0.0
        %608 = vmatprep.subr.mxu0 0.0
        %609 = vmatpush1.xpose.msra.mxu0 0.0
        %610 = vmatprep.subr.mxu0 0.0
        %611 = vmatpush1.xpose.msra.mxu0 0.0
        %612 = vmatprep.mubr.f32.mxu0 0.0
        %613 = vmatmul.mubr.f32.gmra.mrb[0].mxu0 %v534
        %v614 = vpop.f32.mrb[0].mxu0
        %v615 = vadd.f32 0.0, %v614
        %v616 = vpop.f32.mrb[0].mxu0
        %617 = vmatprep.mubr.f32.mxu0 0.0
        %618 = vmatmul.mubr.f32.gmra.mrb[0].mxu0 %v537
        %v619 = vpop.f32.mrb[0].mxu0
        %v620 = vadd.f32 0.0, %v619
        %v621 = vpop.f32.mrb[0].mxu0
        %622 = vdwg.mxu0
        %vm623 = vcmask 195584
        %v624 = vsel %vm623, %v615, -inf
        %625 = vmax.xlane.f32.xlu0 %v624
        %v626 = vpop.xlane.xlu0 %625
        %v627 = vsel %vm623, %v620, -inf
        %628 = vmax.xlane.f32.xlu0 %v627
        %v629 = vpop.xlane.xlu0 %628
        %v630 = vsub.f32 %v615, %v626
        %v631 = vsub.f32 %v620, %v629
        %v632 = vmul.f32 %v630, 1.442695
        %v633 = vpow.pop %v632
        %v634 = vmul.f32 %v631, 1.442695
        %v635 = vpow.pop %v634
        %v636 = vsel %vm623, %v633, 0.0
        %637 = vadd.xlane.f32.xlu0 %v636
        %v638 = vpop.xlane.xlu0 %637
        %v639 = vsel %vm623, %v635, 0.0
        %640 = vadd.xlane.f32.xlu0 %v639
        %v641 = vpop.xlane.xlu0 %640
        %v642 = vrcp.pop %v638
        %v643 = vrcp.pop %v641
        %v644 = vmul.f32 %v633, %v642
        %v645 = vmul.f32 %v635, %v643
        %646 = vrot.lane.b32.xlu0 %v529, 96
        %v647 = vpop.permute.xlu0 %646
        %648 = vrot.lane.b32.xlu0 %v530, 96
        %v649 = vpop.permute.xlu0 %648
        %650 = vrot.lane.b32.xlu0 %v531, 96
        %v651 = vpop.permute.xlu0 %650
        %v656 = vsel %vm623, %v644, 0
        %v659 = vsel %vm623, %v645, 0
        %661 = vmatprep.subr.mxu0 0.0
        %662 = vmatpush1.msra.mxu0 %v647
        %663 = vmatprep.subr.mxu0 0.0
        %664 = vmatpush1.msra.mxu0 %v649
        %665 = vmatprep.subr.mxu0 0.0
        %666 = vmatpush1.msra.mxu0 %v651
        %667 = vmatprep.subr.mxu0 0.0
        %668 = vmatpush1.msra.mxu0 0.0
        %669 = vmatprep.subr.mxu0 0.0
        %670 = vmatpush1.msra.mxu0 0.0
        %671 = vmatprep.subr.mxu0 0.0
        %672 = vmatpush1.msra.mxu0 0.0
        %673 = vmatprep.subr.mxu0 0.0
        %674 = vmatpush1.msra.mxu0 0.0
        %675 = vmatprep.subr.mxu0 0.0
        %676 = vmatpush1.msra.mxu0 0.0
        %677 = vmatprep.subr.mxu0 0.0
        %678 = vmatpush1.msra.mxu0 0.0
        %679 = vmatprep.subr.mxu0 0.0
        %680 = vmatpush1.msra.mxu0 0.0
        %681 = vmatprep.subr.mxu0 0.0
        %682 = vmatpush1.msra.mxu0 0.0
        %683 = vmatprep.subr.mxu0 0.0
        %684 = vmatpush1.msra.mxu0 0.0
        %685 = vmatprep.subr.mxu0 0.0
        %686 = vmatpush1.msra.mxu0 0.0
        %687 = vmatprep.subr.mxu0 0.0
        %688 = vmatpush1.msra.mxu0 0.0
        %689 = vmatprep.subr.mxu0 0.0
        %690 = vmatpush1.msra.mxu0 0.0
        %691 = vmatprep.subr.mxu0 0.0
        %692 = vmatpush1.msra.mxu0 0.0
        %693 = vmatprep.subr.mxu0 0.0
        %694 = vmatpush1.msra.mxu0 0.0
        %695 = vmatprep.subr.mxu0 0.0
        %696 = vmatpush1.msra.mxu0 0.0
        %697 = vmatprep.subr.mxu0 0.0
        %698 = vmatpush1.msra.mxu0 0.0
        %699 = vmatprep.subr.mxu0 0.0
        %700 = vmatpush1.msra.mxu0 0.0
        %701 = vmatprep.subr.mxu0 0.0
        %702 = vmatpush1.msra.mxu0 0.0
        %703 = vmatprep.subr.mxu0 0.0
        %704 = vmatpush1.msra.mxu0 0.0
        %705 = vmatprep.subr.mxu0 0.0
        %706 = vmatpush1.msra.mxu0 0.0
        %707 = vmatprep.subr.mxu0 0.0
        %708 = vmatpush1.msra.mxu0 0.0
        %709 = vmatprep.subr.mxu0 0.0
        %710 = vmatpush1.msra.mxu0 0.0
        %711 = vmatprep.subr.mxu0 0.0
        %712 = vmatpush1.msra.mxu0 0.0
        %713 = vmatprep.subr.mxu0 0.0
        %714 = vmatpush1.msra.mxu0 0.0
        %715 = vmatprep.subr.mxu0 0.0
        %716 = vmatpush1.msra.mxu0 0.0
        %717 = vmatprep.subr.mxu0 0.0
        %718 = vmatpush1.msra.mxu0 0.0
        %719 = vmatprep.subr.mxu0 0.0
        %720 = vmatpush1.msra.mxu0 0.0
        %721 = vmatprep.subr.mxu0 0.0
        %722 = vmatpush1.msra.mxu0 0.0
        %723 = vmatprep.subr.mxu0 0.0
        %724 = vmatpush1.msra.mxu0 0.0
        %725 = vmatprep.mubr.f32.mxu0 0.0
        %726 = vmatmul.mubr.f32.gmra.mrb[0].mxu0 %v656
        %v727 = vpop.f32.mrb[0].mxu0
        %v728 = vadd.f32 0.0, %v727
        %v729 = vpop.f32.mrb[0].mxu0
        %730 = vmatprep.mubr.f32.mxu0 0.0
        %731 = vmatmul.mubr.f32.gmra.mrb[0].mxu0 %v659
        %v732 = vpop.f32.mrb[0].mxu0
        %v733 = vadd.f32 0.0, %v732
        %v734 = vpop.f32.mrb[0].mxu0
        %735 = vdwg.mxu0
        %736 = vst.msk [vmem:[#allocation4] sm:$0xff] %vm532, %v728
        %737 = vst.msk [vmem:[#allocation4 + $0x8] sm:$0xff] %vm532, %v733
        %v738 = vld [vmem:[#allocation2] sm:$0xff]
        %v739 = vld [vmem:[#allocation2 + $0x8] sm:$0xff]
        %v740 = vld [vmem:[#allocation3] sm:$0xff]
        %v741 = vld [vmem:[#allocation3 + $0x8] sm:$0xff]
        %v742 = vld [vmem:[#allocation3 + $0x10] sm:$0xff]
        %745 = vrot.lane.b32.xlu0 %v738, 120
        %v746 = vpop.permute.xlu0 %745
        %747 = vrot.lane.b32.xlu0 %v739, 120
        %v748 = vpop.permute.xlu0 %747
        %752 = vrot.lane.b32.xlu0 %v740, 120
        %v753 = vpop.permute.xlu0 %752
        %754 = vrot.lane.b32.xlu0 %v741, 120
        %v755 = vpop.permute.xlu0 %754
        %756 = vrot.lane.b32.xlu0 %v742, 120
        %v757 = vpop.permute.xlu0 %756
        %v758 = vsel %vm532, %v746, 0
        %v760 = vsel %vm532, %v748, 0
        %v762 = vsel %vm532, %v753, 0
        %v764 = vsel %vm532, %v755, 0
        %v766 = vsel %vm532, %v757, 0
        %768 = vmatprep.subr.mxu0 0.0
        %769 = vmatpush1.xpose.msra.mxu0 %v762
        %770 = vmatprep.subr.mxu0 0.0
        %771 = vmatpush1.xpose.msra.mxu0 %v764
        %772 = vmatprep.subr.mxu0 0.0
        %773 = vmatpush1.xpose.msra.mxu0 %v766
        %774 = vmatprep.subr.mxu0 0.0
        %775 = vmatpush1.xpose.msra.mxu0 0.0
        %776 = vmatprep.subr.mxu0 0.0
        %777 = vmatpush1.xpose.msra.mxu0 0.0
        %778 = vmatprep.subr.mxu0 0.0
        %779 = vmatpush1.xpose.msra.mxu0 0.0
        %780 = vmatprep.subr.mxu0 0.0
        %781 = vmatpush1.xpose.msra.mxu0 0.0
        %782 = vmatprep.subr.mxu0 0.0
        %783 = vmatpush1.xpose.msra.mxu0 0.0
        %784 = vmatprep.subr.mxu0 0.0
        %785 = vmatpush1.xpose.msra.mxu0 0.0
        %786 = vmatprep.subr.mxu0 0.0
        %787 = vmatpush1.xpose.msra.mxu0 0.0
        %788 = vmatprep.subr.mxu0 0.0
        %789 = vmatpush1.xpose.msra.mxu0 0.0
        %790 = vmatprep.subr.mxu0 0.0
        %791 = vmatpush1.xpose.msra.mxu0 0.0
        %792 = vmatprep.subr.mxu0 0.0
        %793 = vmatpush1.xpose.msra.mxu0 0.0
        %794 = vmatprep.subr.mxu0 0.0
        %795 = vmatpush1.xpose.msra.mxu0 0.0
        %796 = vmatprep.subr.mxu0 0.0
        %797 = vmatpush1.xpose.msra.mxu0 0.0
        %798 = vmatprep.subr.mxu0 0.0
        %799 = vmatpush1.xpose.msra.mxu0 0.0
        %800 = vmatprep.subr.mxu0 0.0
        %801 = vmatpush1.xpose.msra.mxu0 0.0
        %802 = vmatprep.subr.mxu0 0.0
        %803 = vmatpush1.xpose.msra.mxu0 0.0
        %804 = vmatprep.subr.mxu0 0.0
        %805 = vmatpush1.xpose.msra.mxu0 0.0
        %806 = vmatprep.subr.mxu0 0.0
        %807 = vmatpush1.xpose.msra.mxu0 0.0
        %808 = vmatprep.subr.mxu0 0.0
        %809 = vmatpush1.xpose.msra.mxu0 0.0
        %810 = vmatprep.subr.mxu0 0.0
        %811 = vmatpush1.xpose.msra.mxu0 0.0
        %812 = vmatprep.subr.mxu0 0.0
        %813 = vmatpush1.xpose.msra.mxu0 0.0
        %814 = vmatprep.subr.mxu0 0.0
        %815 = vmatpush1.xpose.msra.mxu0 0.0
        %816 = vmatprep.subr.mxu0 0.0
        %817 = vmatpush1.xpose.msra.mxu0 0.0
        %818 = vmatprep.subr.mxu0 0.0
        %819 = vmatpush1.xpose.msra.mxu0 0.0
        %820 = vmatprep.subr.mxu0 0.0
        %821 = vmatpush1.xpose.msra.mxu0 0.0
        %822 = vmatprep.subr.mxu0 0.0
        %823 = vmatpush1.xpose.msra.mxu0 0.0
        %824 = vmatprep.subr.mxu0 0.0
        %825 = vmatpush1.xpose.msra.mxu0 0.0
        %826 = vmatprep.subr.mxu0 0.0
        %827 = vmatpush1.xpose.msra.mxu0 0.0
        %828 = vmatprep.subr.mxu0 0.0
        %829 = vmatpush1.xpose.msra.mxu0 0.0
        %830 = vmatprep.subr.mxu0 0.0
        %831 = vmatpush1.xpose.msra.mxu0 0.0
        %832 = vmatprep.mubr.f32.mxu0 0.0
        %833 = vmatmul.mubr.f32.gmra.mrb[0].mxu0 %v758
        %v834 = vpop.f32.mrb[0].mxu0
        %v835 = vadd.f32 0.0, %v834
        %v836 = vpop.f32.mrb[0].mxu0
        %837 = vmatprep.mubr.f32.mxu0 0.0
        %838 = vmatmul.mubr.f32.gmra.mrb[0].mxu0 %v760
        %v839 = vpop.f32.mrb[0].mxu0
        %v840 = vadd.f32 0.0, %v839
        %v841 = vpop.f32.mrb[0].mxu0
        %842 = vdwg.mxu0
        %v843 = vsel %vm623, %v835, -inf
        %844 = vmax.xlane.f32.xlu0 %v843
        %v845 = vpop.xlane.xlu0 %844
        %v846 = vsel %vm623, %v840, -inf
        %847 = vmax.xlane.f32.xlu0 %v846
        %v848 = vpop.xlane.xlu0 %847
        %v849 = vsub.f32 %v835, %v845
        %v850 = vsub.f32 %v840, %v848
        %v851 = vmul.f32 %v849, 1.442695
        %v852 = vpow.pop %v851
        %v853 = vmul.f32 %v850, 1.442695
        %v854 = vpow.pop %v853
        %v855 = vsel %vm623, %v852, 0.0
        %856 = vadd.xlane.f32.xlu0 %v855
        %v857 = vpop.xlane.xlu0 %856
        %v858 = vsel %vm623, %v854, 0.0
        %859 = vadd.xlane.f32.xlu0 %v858
        %v860 = vpop.xlane.xlu0 %859
        %v861 = vrcp.pop %v857
        %v862 = vrcp.pop %v860
        %v863 = vmul.f32 %v852, %v861
        %v864 = vmul.f32 %v854, %v862
        %865 = vrot.lane.b32.xlu0 %v740, 88
        %v866 = vpop.permute.xlu0 %865
        %867 = vrot.lane.b32.xlu0 %v741, 88
        %v868 = vpop.permute.xlu0 %867
        %869 = vrot.lane.b32.xlu0 %v742, 88
        %v870 = vpop.permute.xlu0 %869
        %v875 = vsel %vm623, %v863, 0
        %v878 = vsel %vm623, %v864, 0
        %880 = vmatprep.subr.mxu0 0.0
        %881 = vmatpush1.msra.mxu0 %v866
        %882 = vmatprep.subr.mxu0 0.0
        %883 = vmatpush1.msra.mxu0 %v868
        %884 = vmatprep.subr.mxu0 0.0
        %885 = vmatpush1.msra.mxu0 %v870
        %886 = vmatprep.subr.mxu0 0.0
        %887 = vmatpush1.msra.mxu0 0.0
        %888 = vmatprep.subr.mxu0 0.0
        %889 = vmatpush1.msra.mxu0 0.0
        %890 = vmatprep.subr.mxu0 0.0
        %891 = vmatpush1.msra.mxu0 0.0
        %892 = vmatprep.subr.mxu0 0.0
        %893 = vmatpush1.msra.mxu0 0.0
        %894 = vmatprep.subr.mxu0 0.0
        %895 = vmatpush1.msra.mxu0 0.0
        %896 = vmatprep.subr.mxu0 0.0
        %897 = vmatpush1.msra.mxu0 0.0
        %898 = vmatprep.subr.mxu0 0.0
        %899 = vmatpush1.msra.mxu0 0.0
        %900 = vmatprep.subr.mxu0 0.0
        %901 = vmatpush1.msra.mxu0 0.0
        %902 = vmatprep.subr.mxu0 0.0
        %903 = vmatpush1.msra.mxu0 0.0
        %904 = vmatprep.subr.mxu0 0.0
        %905 = vmatpush1.msra.mxu0 0.0
        %906 = vmatprep.subr.mxu0 0.0
        %907 = vmatpush1.msra.mxu0 0.0
        %908 = vmatprep.subr.mxu0 0.0
        %909 = vmatpush1.msra.mxu0 0.0
        %910 = vmatprep.subr.mxu0 0.0
        %911 = vmatpush1.msra.mxu0 0.0
        %912 = vmatprep.subr.mxu0 0.0
        %913 = vmatpush1.msra.mxu0 0.0
        %914 = vmatprep.subr.mxu0 0.0
        %915 = vmatpush1.msra.mxu0 0.0
        %916 = vmatprep.subr.mxu0 0.0
        %917 = vmatpush1.msra.mxu0 0.0
        %918 = vmatprep.subr.mxu0 0.0
        %919 = vmatpush1.msra.mxu0 0.0
        %920 = vmatprep.subr.mxu0 0.0
        %921 = vmatpush1.msra.mxu0 0.0
        %922 = vmatprep.subr.mxu0 0.0
        %923 = vmatpush1.msra.mxu0 0.0
        %924 = vmatprep.subr.mxu0 0.0
        %925 = vmatpush1.msra.mxu0 0.0
        %926 = vmatprep.subr.mxu0 0.0
        %927 = vmatpush1.msra.mxu0 0.0
        %928 = vmatprep.subr.mxu0 0.0
        %929 = vmatpush1.msra.mxu0 0.0
        %930 = vmatprep.subr.mxu0 0.0
        %931 = vmatpush1.msra.mxu0 0.0
        %932 = vmatprep.subr.mxu0 0.0
        %933 = vmatpush1.msra.mxu0 0.0
        %934 = vmatprep.subr.mxu0 0.0
        %935 = vmatpush1.msra.mxu0 0.0
        %936 = vmatprep.subr.mxu0 0.0
        %937 = vmatpush1.msra.mxu0 0.0
        %938 = vmatprep.subr.mxu0 0.0
        %939 = vmatpush1.msra.mxu0 0.0
        %940 = vmatprep.subr.mxu0 0.0
        %941 = vmatpush1.msra.mxu0 0.0
        %942 = vmatprep.subr.mxu0 0.0
        %943 = vmatpush1.msra.mxu0 0.0
        %944 = vmatprep.mubr.f32.mxu0 0.0
        %945 = vmatmul.mubr.f32.gmra.mrb[0].mxu0 %v875
        %v946 = vpop.f32.mrb[0].mxu0
        %v947 = vadd.f32 0.0, %v946
        %v948 = vpop.f32.mrb[0].mxu0
        %949 = vmatprep.mubr.f32.mxu0 0.0
        %950 = vmatmul.mubr.f32.gmra.mrb[0].mxu0 %v878
        %v951 = vpop.f32.mrb[0].mxu0
        %v952 = vadd.f32 0.0, %v951
        %v953 = vpop.f32.mrb[0].mxu0
        %954 = vdwg.mxu0
        %957 = vrot.lane.b32.xlu0 %v947, 8
        %v958 = vpop.permute.xlu0 %957
        %959 = vrot.lane.b32.xlu0 %v952, 8
        %v960 = vpop.permute.xlu0 %959
        %vm963 = vcmask 130112
        %964 = vst.msk [vmem:[#allocation4] sm:$0xff] %vm963, %v958
        %965 = vst.msk [vmem:[#allocation4 + $0x8] sm:$0xff] %vm963, %v960
        %v966 = vld [vmem:[#allocation2] sm:$0xff]
        %v967 = vld [vmem:[#allocation2 + $0x8] sm:$0xff]
        %v968 = vld [vmem:[#allocation3] sm:$0xff]
        %v969 = vld [vmem:[#allocation3 + $0x8] sm:$0xff]
        %v970 = vld [vmem:[#allocation3 + $0x10] sm:$0xff]
        %973 = vrot.lane.b32.xlu0 %v966, 112
        %v974 = vpop.permute.xlu0 %973
        %975 = vrot.lane.b32.xlu0 %v967, 112
        %v976 = vpop.permute.xlu0 %975
        %980 = vrot.lane.b32.xlu0 %v968, 112
        %v981 = vpop.permute.xlu0 %980
        %982 = vrot.lane.b32.xlu0 %v969, 112
        %v983 = vpop.permute.xlu0 %982
        %984 = vrot.lane.b32.xlu0 %v970, 112
        %v985 = vpop.permute.xlu0 %984
        %v986 = vsel %vm532, %v974, 0
        %v988 = vsel %vm532, %v976, 0
        %v990 = vsel %vm532, %v981, 0
        %v992 = vsel %vm532, %v983, 0
        %v994 = vsel %vm532, %v985, 0
        %996 = vmatprep.subr.mxu0 0.0
        %997 = vmatpush1.xpose.msra.mxu0 %v990
        %998 = vmatprep.subr.mxu0 0.0
        %999 = vmatpush1.xpose.msra.mxu0 %v992
        %1000 = vmatprep.subr.mxu0 0.0
        %1001 = vmatpush1.xpose.msra.mxu0 %v994
        %1002 = vmatprep.subr.mxu0 0.0
        %1003 = vmatpush1.xpose.msra.mxu0 0.0
        %1004 = vmatprep.subr.mxu0 0.0
        %1005 = vmatpush1.xpose.msra.mxu0 0.0
        %1006 = vmatprep.subr.mxu0 0.0
        %1007 = vmatpush1.xpose.msra.mxu0 0.0
        %1008 = vmatprep.subr.mxu0 0.0
        %1009 = vmatpush1.xpose.msra.mxu0 0.0
        %1010 = vmatprep.subr.mxu0 0.0
        %1011 = vmatpush1.xpose.msra.mxu0 0.0
        %1012 = vmatprep.subr.mxu0 0.0
        %1013 = vmatpush1.xpose.msra.mxu0 0.0
        %1014 = vmatprep.subr.mxu0 0.0
        %1015 = vmatpush1.xpose.msra.mxu0 0.0
        %1016 = vmatprep.subr.mxu0 0.0
        %1017 = vmatpush1.xpose.msra.mxu0 0.0
        %1018 = vmatprep.subr.mxu0 0.0
        %1019 = vmatpush1.xpose.msra.mxu0 0.0
        %1020 = vmatprep.subr.mxu0 0.0
        %1021 = vmatpush1.xpose.msra.mxu0 0.0
        %1022 = vmatprep.subr.mxu0 0.0
        %1023 = vmatpush1.xpose.msra.mxu0 0.0
        %1024 = vmatprep.subr.mxu0 0.0
        %1025 = vmatpush1.xpose.msra.mxu0 0.0
        %1026 = vmatprep.subr.mxu0 0.0
        %1027 = vmatpush1.xpose.msra.mxu0 0.0
        %1028 = vmatprep.subr.mxu0 0.0
        %1029 = vmatpush1.xpose.msra.mxu0 0.0
        %1030 = vmatprep.subr.mxu0 0.0
        %1031 = vmatpush1.xpose.msra.mxu0 0.0
        %1032 = vmatprep.subr.mxu0 0.0
        %1033 = vmatpush1.xpose.msra.mxu0 0.0
        %1034 = vmatprep.subr.mxu0 0.0
        %1035 = vmatpush1.xpose.msra.mxu0 0.0
        %1036 = vmatprep.subr.mxu0 0.0
        %1037 = vmatpush1.xpose.msra.mxu0 0.0
        %1038 = vmatprep.subr.mxu0 0.0
        %1039 = vmatpush1.xpose.msra.mxu0 0.0
        %1040 = vmatprep.subr.mxu0 0.0
        %1041 = vmatpush1.xpose.msra.mxu0 0.0
        %1042 = vmatprep.subr.mxu0 0.0
        %1043 = vmatpush1.xpose.msra.mxu0 0.0
        %1044 = vmatprep.subr.mxu0 0.0
        %1045 = vmatpush1.xpose.msra.mxu0 0.0
        %1046 = vmatprep.subr.mxu0 0.0
        %1047 = vmatpush1.xpose.msra.mxu0 0.0
        %1048 = vmatprep.subr.mxu0 0.0
        %1049 = vmatpush1.xpose.msra.mxu0 0.0
        %1050 = vmatprep.subr.mxu0 0.0
        %1051 = vmatpush1.xpose.msra.mxu0 0.0
        %1052 = vmatprep.subr.mxu0 0.0
        %1053 = vmatpush1.xpose.msra.mxu0 0.0
        %1054 = vmatprep.subr.mxu0 0.0
        %1055 = vmatpush1.xpose.msra.mxu0 0.0
        %1056 = vmatprep.subr.mxu0 0.0
        %1057 = vmatpush1.xpose.msra.mxu0 0.0
        %1058 = vmatprep.subr.mxu0 0.0
        %1059 = vmatpush1.xpose.msra.mxu0 0.0
        %1060 = vmatprep.mubr.f32.mxu0 0.0
        %1061 = vmatmul.mubr.f32.gmra.mrb[0].mxu0 %v986
        %v1062 = vpop.f32.mrb[0].mxu0
        %v1063 = vadd.f32 0.0, %v1062
        %v1064 = vpop.f32.mrb[0].mxu0
        %1065 = vmatprep.mubr.f32.mxu0 0.0
        %1066 = vmatmul.mubr.f32.gmra.mrb[0].mxu0 %v988
        %v1067 = vpop.f32.mrb[0].mxu0
        %v1068 = vadd.f32 0.0, %v1067
        %v1069 = vpop.f32.mrb[0].mxu0
        %1070 = vdwg.mxu0
        %v1071 = vsel %vm623, %v1063, -inf
        %1072 = vmax.xlane.f32.xlu0 %v1071
        %v1073 = vpop.xlane.xlu0 %1072
        %v1074 = vsel %vm623, %v1068, -inf
        %1075 = vmax.xlane.f32.xlu0 %v1074
        %v1076 = vpop.xlane.xlu0 %1075
        %v1077 = vsub.f32 %v1063, %v1073
        %v1078 = vsub.f32 %v1068, %v1076
        %v1079 = vmul.f32 %v1077, 1.442695
        %v1080 = vpow.pop %v1079
        %v1081 = vmul.f32 %v1078, 1.442695
        %v1082 = vpow.pop %v1081
        %v1083 = vsel %vm623, %v1080, 0.0
        %1084 = vadd.xlane.f32.xlu0 %v1083
        %v1085 = vpop.xlane.xlu0 %1084
        %v1086 = vsel %vm623, %v1082, 0.0
        %1087 = vadd.xlane.f32.xlu0 %v1086
        %v1088 = vpop.xlane.xlu0 %1087
        %v1089 = vrcp.pop %v1085
        %v1090 = vrcp.pop %v1088
        %v1091 = vmul.f32 %v1080, %v1089
        %v1092 = vmul.f32 %v1082, %v1090
        %1093 = vrot.lane.b32.xlu0 %v968, 80
        %v1094 = vpop.permute.xlu0 %1093
        %1095 = vrot.lane.b32.xlu0 %v969, 80
        %v1096 = vpop.permute.xlu0 %1095
        %1097 = vrot.lane.b32.xlu0 %v970, 80
        %v1098 = vpop.permute.xlu0 %1097
        %v1103 = vsel %vm623, %v1091, 0
        %v1106 = vsel %vm623, %v1092, 0
        %1108 = vmatprep.subr.mxu0 0.0
        %1109 = vmatpush1.msra.mxu0 %v1094
        %1110 = vmatprep.subr.mxu0 0.0
        %1111 = vmatpush1.msra.mxu0 %v1096
        %1112 = vmatprep.subr.mxu0 0.0
        %1113 = vmatpush1.msra.mxu0 %v1098
        %1114 = vmatprep.subr.mxu0 0.0
        %1115 = vmatpush1.msra.mxu0 0.0
        %1116 = vmatprep.subr.mxu0 0.0
        %1117 = vmatpush1.msra.mxu0 0.0
        %1118 = vmatprep.subr.mxu0 0.0
        %1119 = vmatpush1.msra.mxu0 0.0
        %1120 = vmatprep.subr.mxu0 0.0
        %1121 = vmatpush1.msra.mxu0 0.0
        %1122 = vmatprep.subr.mxu0 0.0
        %1123 = vmatpush1.msra.mxu0 0.0
        %1124 = vmatprep.subr.mxu0 0.0
        %1125 = vmatpush1.msra.mxu0 0.0
        %1126 = vmatprep.subr.mxu0 0.0
        %1127 = vmatpush1.msra.mxu0 0.0
        %1128 = vmatprep.subr.mxu0 0.0
        %1129 = vmatpush1.msra.mxu0 0.0
        %1130 = vmatprep.subr.mxu0 0.0
        %1131 = vmatpush1.msra.mxu0 0.0
        %1132 = vmatprep.subr.mxu0 0.0
        %1133 = vmatpush1.msra.mxu0 0.0
        %1134 = vmatprep.subr.mxu0 0.0
        %1135 = vmatpush1.msra.mxu0 0.0
        %1136 = vmatprep.subr.mxu0 0.0
        %1137 = vmatpush1.msra.mxu0 0.0
        %1138 = vmatprep.subr.mxu0 0.0
        %1139 = vmatpush1.msra.mxu0 0.0
        %1140 = vmatprep.subr.mxu0 0.0
        %1141 = vmatpush1.msra.mxu0 0.0
        %1142 = vmatprep.subr.mxu0 0.0
        %1143 = vmatpush1.msra.mxu0 0.0
        %1144 = vmatprep.subr.mxu0 0.0
        %1145 = vmatpush1.msra.mxu0 0.0
        %1146 = vmatprep.subr.mxu0 0.0
        %1147 = vmatpush1.msra.mxu0 0.0
        %1148 = vmatprep.subr.mxu0 0.0
        %1149 = vmatpush1.msra.mxu0 0.0
        %1150 = vmatprep.subr.mxu0 0.0
        %1151 = vmatpush1.msra.mxu0 0.0
        %1152 = vmatprep.subr.mxu0 0.0
        %1153 = vmatpush1.msra.mxu0 0.0
        %1154 = vmatprep.subr.mxu0 0.0
        %1155 = vmatpush1.msra.mxu0 0.0
        %1156 = vmatprep.subr.mxu0 0.0
        %1157 = vmatpush1.msra.mxu0 0.0
        %1158 = vmatprep.subr.mxu0 0.0
        %1159 = vmatpush1.msra.mxu0 0.0
        %1160 = vmatprep.subr.mxu0 0.0
        %1161 = vmatpush1.msra.mxu0 0.0
        %1162 = vmatprep.subr.mxu0 0.0
        %1163 = vmatpush1.msra.mxu0 0.0
        %1164 = vmatprep.subr.mxu0 0.0
        %1165 = vmatpush1.msra.mxu0 0.0
        %1166 = vmatprep.subr.mxu0 0.0
        %1167 = vmatpush1.msra.mxu0 0.0
        %1168 = vmatprep.subr.mxu0 0.0
        %1169 = vmatpush1.msra.mxu0 0.0
        %1170 = vmatprep.subr.mxu0 0.0
        %1171 = vmatpush1.msra.mxu0 0.0
        %1172 = vmatprep.mubr.f32.mxu0 0.0
        %1173 = vmatmul.mubr.f32.gmra.mrb[0].mxu0 %v1103
        %v1174 = vpop.f32.mrb[0].mxu0
        %v1175 = vadd.f32 0.0, %v1174
        %v1176 = vpop.f32.mrb[0].mxu0
        %1177 = vmatprep.mubr.f32.mxu0 0.0
        %1178 = vmatmul.mubr.f32.gmra.mrb[0].mxu0 %v1106
        %v1179 = vpop.f32.mrb[0].mxu0
        %v1180 = vadd.f32 0.0, %v1179
        %v1181 = vpop.f32.mrb[0].mxu0
        %1182 = vdwg.mxu0
        %1185 = vrot.lane.b32.xlu0 %v1175, 16
        %v1186 = vpop.permute.xlu0 %1185
        %1187 = vrot.lane.b32.xlu0 %v1180, 16
        %v1188 = vpop.permute.xlu0 %1187
        %vm1191 = vcmask 195712
        %1192 = vst.msk [vmem:[#allocation4] sm:$0xff] %vm1191, %v1186
        %1193 = vst.msk [vmem:[#allocation4 + $0x8] sm:$0xff] %vm1191, %v1188
        %v1194 = vld [vmem:[#allocation2] sm:$0xff]
        %v1195 = vld [vmem:[#allocation2 + $0x8] sm:$0xff]
        %v1196 = vld [vmem:[#allocation3] sm:$0xff]
        %v1197 = vld [vmem:[#allocation3 + $0x8] sm:$0xff]
        %v1198 = vld [vmem:[#allocation3 + $0x10] sm:$0xff]
        %1201 = vrot.lane.b32.xlu0 %v1194, 104
        %v1202 = vpop.permute.xlu0 %1201
        %1203 = vrot.lane.b32.xlu0 %v1195, 104
        %v1204 = vpop.permute.xlu0 %1203
        %1208 = vrot.lane.b32.xlu0 %v1196, 104
        %v1209 = vpop.permute.xlu0 %1208
        %1210 = vrot.lane.b32.xlu0 %v1197, 104
        %v1211 = vpop.permute.xlu0 %1210
        %1212 = vrot.lane.b32.xlu0 %v1198, 104
        %v1213 = vpop.permute.xlu0 %1212
        %v1214 = vsel %vm532, %v1202, 0
        %v1216 = vsel %vm532, %v1204, 0
        %v1218 = vsel %vm532, %v1209, 0
        %v1220 = vsel %vm532, %v1211, 0
        %v1222 = vsel %vm532, %v1213, 0
        %1224 = vmatprep.subr.mxu0 0.0
        %1225 = vmatpush1.xpose.msra.mxu0 %v1218
        %1226 = vmatprep.subr.mxu0 0.0
        %1227 = vmatpush1.xpose.msra.mxu0 %v1220
        %1228 = vmatprep.subr.mxu0 0.0
        %1229 = vmatpush1.xpose.msra.mxu0 %v1222
        %1230 = vmatprep.subr.mxu0 0.0
        %1231 = vmatpush1.xpose.msra.mxu0 0.0
        %1232 = vmatprep.subr.mxu0 0.0
        %1233 = vmatpush1.xpose.msra.mxu0 0.0
        %1234 = vmatprep.subr.mxu0 0.0
        %1235 = vmatpush1.xpose.msra.mxu0 0.0
        %1236 = vmatprep.subr.mxu0 0.0
        %1237 = vmatpush1.xpose.msra.mxu0 0.0
        %1238 = vmatprep.subr.mxu0 0.0
        %1239 = vmatpush1.xpose.msra.mxu0 0.0
        %1240 = vmatprep.subr.mxu0 0.0
        %1241 = vmatpush1.xpose.msra.mxu0 0.0
        %1242 = vmatprep.subr.mxu0 0.0
        %1243 = vmatpush1.xpose.msra.mxu0 0.0
        %1244 = vmatprep.subr.mxu0 0.0
        %1245 = vmatpush1.xpose.msra.mxu0 0.0
        %1246 = vmatprep.subr.mxu0 0.0
        %1247 = vmatpush1.xpose.msra.mxu0 0.0
        %1248 = vmatprep.subr.mxu0 0.0
        %1249 = vmatpush1.xpose.msra.mxu0 0.0
        %1250 = vmatprep.subr.mxu0 0.0
        %1251 = vmatpush1.xpose.msra.mxu0 0.0
        %1252 = vmatprep.subr.mxu0 0.0
        %1253 = vmatpush1.xpose.msra.mxu0 0.0
        %1254 = vmatprep.subr.mxu0 0.0
        %1255 = vmatpush1.xpose.msra.mxu0 0.0
        %1256 = vmatprep.subr.mxu0 0.0
        %1257 = vmatpush1.xpose.msra.mxu0 0.0
        %1258 = vmatprep.subr.mxu0 0.0
        %1259 = vmatpush1.xpose.msra.mxu0 0.0
        %1260 = vmatprep.subr.mxu0 0.0
        %1261 = vmatpush1.xpose.msra.mxu0 0.0
        %1262 = vmatprep.subr.mxu0 0.0
        %1263 = vmatpush1.xpose.msra.mxu0 0.0
        %1264 = vmatprep.subr.mxu0 0.0
        %1265 = vmatpush1.xpose.msra.mxu0 0.0
        %1266 = vmatprep.subr.mxu0 0.0
        %1267 = vmatpush1.xpose.msra.mxu0 0.0
        %1268 = vmatprep.subr.mxu0 0.0
        %1269 = vmatpush1.xpose.msra.mxu0 0.0
        %1270 = vmatprep.subr.mxu0 0.0
        %1271 = vmatpush1.xpose.msra.mxu0 0.0
        %1272 = vmatprep.subr.mxu0 0.0
        %1273 = vmatpush1.xpose.msra.mxu0 0.0
        %1274 = vmatprep.subr.mxu0 0.0
        %1275 = vmatpush1.xpose.msra.mxu0 0.0
        %1276 = vmatprep.subr.mxu0 0.0
        %1277 = vmatpush1.xpose.msra.mxu0 0.0
        %1278 = vmatprep.subr.mxu0 0.0
        %1279 = vmatpush1.xpose.msra.mxu0 0.0
        %1280 = vmatprep.subr.mxu0 0.0
        %1281 = vmatpush1.xpose.msra.mxu0 0.0
        %1282 = vmatprep.subr.mxu0 0.0
        %1283 = vmatpush1.xpose.msra.mxu0 0.0
        %1284 = vmatprep.subr.mxu0 0.0
        %1285 = vmatpush1.xpose.msra.mxu0 0.0
        %1286 = vmatprep.subr.mxu0 0.0
        %1287 = vmatpush1.xpose.msra.mxu0 0.0
        %1288 = vmatprep.mubr.f32.mxu0 0.0
        %1289 = vmatmul.mubr.f32.gmra.mrb[0].mxu0 %v1214
        %v1290 = vpop.f32.mrb[0].mxu0
        %v1291 = vadd.f32 0.0, %v1290
        %v1292 = vpop.f32.mrb[0].mxu0
        %1293 = vmatprep.mubr.f32.mxu0 0.0
        %1294 = vmatmul.mubr.f32.gmra.mrb[0].mxu0 %v1216
        %v1295 = vpop.f32.mrb[0].mxu0
        %v1296 = vadd.f32 0.0, %v1295
        %v1297 = vpop.f32.mrb[0].mxu0
        %1298 = vdwg.mxu0
        %v1299 = vsel %vm623, %v1291, -inf
        %1300 = vmax.xlane.f32.xlu0 %v1299
        %v1301 = vpop.xlane.xlu0 %1300
        %v1302 = vsel %vm623, %v1296, -inf
        %1303 = vmax.xlane.f32.xlu0 %v1302
        %v1304 = vpop.xlane.xlu0 %1303
        %v1305 = vsub.f32 %v1291, %v1301
        %v1306 = vsub.f32 %v1296, %v1304
        %v1307 = vmul.f32 %v1305, 1.442695
        %v1308 = vpow.pop %v1307
        %v1309 = vmul.f32 %v1306, 1.442695
        %v1310 = vpow.pop %v1309
        %v1311 = vsel %vm623, %v1308, 0.0
        %1312 = vadd.xlane.f32.xlu0 %v1311
        %v1313 = vpop.xlane.xlu0 %1312
        %v1314 = vsel %vm623, %v1310, 0.0
        %1315 = vadd.xlane.f32.xlu0 %v1314
        %v1316 = vpop.xlane.xlu0 %1315
        %v1317 = vrcp.pop %v1313
        %v1318 = vrcp.pop %v1316
        %v1319 = vmul.f32 %v1308, %v1317
        %v1320 = vmul.f32 %v1310, %v1318
        %1321 = vrot.lane.b32.xlu0 %v1196, 72
        %v1322 = vpop.permute.xlu0 %1321
        %1323 = vrot.lane.b32.xlu0 %v1197, 72
        %v1324 = vpop.permute.xlu0 %1323
        %1325 = vrot.lane.b32.xlu0 %v1198, 72
        %v1326 = vpop.permute.xlu0 %1325
        %v1331 = vsel %vm623, %v1319, 0
        %v1334 = vsel %vm623, %v1320, 0
        %1336 = vmatprep.subr.mxu0 0.0
        %1337 = vmatpush1.msra.mxu0 %v1322
        %1338 = vmatprep.subr.mxu0 0.0
        %1339 = vmatpush1.msra.mxu0 %v1324
        %1340 = vmatprep.subr.mxu0 0.0
        %1341 = vmatpush1.msra.mxu0 %v1326
        %1342 = vmatprep.subr.mxu0 0.0
        %1343 = vmatpush1.msra.mxu0 0.0
        %1344 = vmatprep.subr.mxu0 0.0
        %1345 = vmatpush1.msra.mxu0 0.0
        %1346 = vmatprep.subr.mxu0 0.0
        %1347 = vmatpush1.msra.mxu0 0.0
        %1348 = vmatprep.subr.mxu0 0.0
        %1349 = vmatpush1.msra.mxu0 0.0
        %1350 = vmatprep.subr.mxu0 0.0
        %1351 = vmatpush1.msra.mxu0 0.0
        %1352 = vmatprep.subr.mxu0 0.0
        %1353 = vmatpush1.msra.mxu0 0.0
        %1354 = vmatprep.subr.mxu0 0.0
        %1355 = vmatpush1.msra.mxu0 0.0
        %1356 = vmatprep.subr.mxu0 0.0
        %1357 = vmatpush1.msra.mxu0 0.0
        %1358 = vmatprep.subr.mxu0 0.0
        %1359 = vmatpush1.msra.mxu0 0.0
        %1360 = vmatprep.subr.mxu0 0.0
        %1361 = vmatpush1.msra.mxu0 0.0
        %1362 = vmatprep.subr.mxu0 0.0
        %1363 = vmatpush1.msra.mxu0 0.0
        %1364 = vmatprep.subr.mxu0 0.0
        %1365 = vmatpush1.msra.mxu0 0.0
        %1366 = vmatprep.subr.mxu0 0.0
        %1367 = vmatpush1.msra.mxu0 0.0
        %1368 = vmatprep.subr.mxu0 0.0
        %1369 = vmatpush1.msra.mxu0 0.0
        %1370 = vmatprep.subr.mxu0 0.0
        %1371 = vmatpush1.msra.mxu0 0.0
        %1372 = vmatprep.subr.mxu0 0.0
        %1373 = vmatpush1.msra.mxu0 0.0
        %1374 = vmatprep.subr.mxu0 0.0
        %1375 = vmatpush1.msra.mxu0 0.0
        %1376 = vmatprep.subr.mxu0 0.0
        %1377 = vmatpush1.msra.mxu0 0.0
        %1378 = vmatprep.subr.mxu0 0.0
        %1379 = vmatpush1.msra.mxu0 0.0
        %1380 = vmatprep.subr.mxu0 0.0
        %1381 = vmatpush1.msra.mxu0 0.0
        %1382 = vmatprep.subr.mxu0 0.0
        %1383 = vmatpush1.msra.mxu0 0.0
        %1384 = vmatprep.subr.mxu0 0.0
        %1385 = vmatpush1.msra.mxu0 0.0
        %1386 = vmatprep.subr.mxu0 0.0
        %1387 = vmatpush1.msra.mxu0 0.0
        %1388 = vmatprep.subr.mxu0 0.0
        %1389 = vmatpush1.msra.mxu0 0.0
        %1390 = vmatprep.subr.mxu0 0.0
        %1391 = vmatpush1.msra.mxu0 0.0
        %1392 = vmatprep.subr.mxu0 0.0
        %1393 = vmatpush1.msra.mxu0 0.0
        %1394 = vmatprep.subr.mxu0 0.0
        %1395 = vmatpush1.msra.mxu0 0.0
        %1396 = vmatprep.subr.mxu0 0.0
        %1397 = vmatpush1.msra.mxu0 0.0
        %1398 = vmatprep.subr.mxu0 0.0
        %1399 = vmatpush1.msra.mxu0 0.0
        %1400 = vmatprep.mubr.f32.mxu0 0.0
        %1401 = vmatmul.mubr.f32.gmra.mrb[0].mxu0 %v1331
        %v1402 = vpop.f32.mrb[0].mxu0
        %v1403 = vadd.f32 0.0, %v1402
        %v1404 = vpop.f32.mrb[0].mxu0
        %1405 = vmatprep.mubr.f32.mxu0 0.0
        %1406 = vmatmul.mubr.f32.gmra.mrb[0].mxu0 %v1334
        %v1407 = vpop.f32.mrb[0].mxu0
        %v1408 = vadd.f32 0.0, %v1407
        %v1409 = vpop.f32.mrb[0].mxu0
        %1410 = vdwg.mxu0
        %1413 = vrot.lane.b32.xlu0 %v1403, 24
        %v1414 = vpop.permute.xlu0 %1413
        %1415 = vrot.lane.b32.xlu0 %v1408, 24
        %v1416 = vpop.permute.xlu0 %1415
        %vm1419 = vcmask 261312
        %1420 = vst.msk [vmem:[#allocation4] sm:$0xff] %vm1419, %v1414
        %1421 = vst.msk [vmem:[#allocation4 + $0x8] sm:$0xff] %vm1419, %v1416
        %v1422 = vld [vmem:[#allocation4] sm:$0xff]
        %v1423 = vld [vmem:[#allocation4 + $0x8] sm:$0xff]
        %v1424 = vld [vmem:[%s4] sm:$0xff]
        %v1425 = vld [vmem:[%s4 + $0x8] sm:$0xff]
        %v1426 = vld [vmem:[%s4 + $0x10] sm:$0xff]
        %v1427 = vld [vmem:[%s4 + $0x18] sm:$0xff]
        %v1429 = vsel %vm524, %v1422, 0
        %v1432 = vsel %vm524, %v1423, 0
        %1434 = vmatprep.subr.mxu0 0.0
        %1435 = vmatpush1.msra.mxu0 %v1424
        %1436 = vmatprep.subr.mxu0 0.0
        %1437 = vmatpush1.msra.mxu0 %v1425
        %1438 = vmatprep.subr.mxu0 0.0
        %1439 = vmatpush1.msra.mxu0 %v1426
        %1440 = vmatprep.subr.mxu0 0.0
        %1441 = vmatpush1.msra.mxu0 %v1427
        %1442 = vmatprep.subr.mxu0 0.0
        %1443 = vmatpush1.msra.mxu0 0.0
        %1444 = vmatprep.subr.mxu0 0.0
        %1445 = vmatpush1.msra.mxu0 0.0
        %1446 = vmatprep.subr.mxu0 0.0
        %1447 = vmatpush1.msra.mxu0 0.0
        %1448 = vmatprep.subr.mxu0 0.0
        %1449 = vmatpush1.msra.mxu0 0.0
        %1450 = vmatprep.subr.mxu0 0.0
        %1451 = vmatpush1.msra.mxu0 0.0
        %1452 = vmatprep.subr.mxu0 0.0
        %1453 = vmatpush1.msra.mxu0 0.0
        %1454 = vmatprep.subr.mxu0 0.0
        %1455 = vmatpush1.msra.mxu0 0.0
        %1456 = vmatprep.subr.mxu0 0.0
        %1457 = vmatpush1.msra.mxu0 0.0
        %1458 = vmatprep.subr.mxu0 0.0
        %1459 = vmatpush1.msra.mxu0 0.0
        %1460 = vmatprep.subr.mxu0 0.0
        %1461 = vmatpush1.msra.mxu0 0.0
        %1462 = vmatprep.subr.mxu0 0.0
        %1463 = vmatpush1.msra.mxu0 0.0
        %1464 = vmatprep.subr.mxu0 0.0
        %1465 = vmatpush1.msra.mxu0 0.0
        %1466 = vmatprep.subr.mxu0 0.0
        %1467 = vmatpush1.msra.mxu0 0.0
        %1468 = vmatprep.subr.mxu0 0.0
        %1469 = vmatpush1.msra.mxu0 0.0
        %1470 = vmatprep.subr.mxu0 0.0
        %1471 = vmatpush1.msra.mxu0 0.0
        %1472 = vmatprep.subr.mxu0 0.0
        %1473 = vmatpush1.msra.mxu0 0.0
        %1474 = vmatprep.subr.mxu0 0.0
        %1475 = vmatpush1.msra.mxu0 0.0
        %1476 = vmatprep.subr.mxu0 0.0
        %1477 = vmatpush1.msra.mxu0 0.0
        %1478 = vmatprep.subr.mxu0 0.0
        %1479 = vmatpush1.msra.mxu0 0.0
        %1480 = vmatprep.subr.mxu0 0.0
        %1481 = vmatpush1.msra.mxu0 0.0
        %1482 = vmatprep.subr.mxu0 0.0
        %1483 = vmatpush1.msra.mxu0 0.0
        %1484 = vmatprep.subr.mxu0 0.0
        %1485 = vmatpush1.msra.mxu0 0.0
        %1486 = vmatprep.subr.mxu0 0.0
        %1487 = vmatpush1.msra.mxu0 0.0
        %1488 = vmatprep.subr.mxu0 0.0
        %1489 = vmatpush1.msra.mxu0 0.0
        %1490 = vmatprep.subr.mxu0 0.0
        %1491 = vmatpush1.msra.mxu0 0.0
        %1492 = vmatprep.subr.mxu0 0.0
        %1493 = vmatpush1.msra.mxu0 0.0
        %1494 = vmatprep.subr.mxu0 0.0
        %1495 = vmatpush1.msra.mxu0 0.0
        %1496 = vmatprep.subr.mxu0 0.0
        %1497 = vmatpush1.msra.mxu0 0.0
        %1498 = vmatprep.mubr.f32.mxu0 0.0
        %1499 = vmatmul.mubr.f32.gmra.mrb[0].mxu0 %v1429
        %v1500 = vpop.f32.mrb[0].mxu0
        %v1501 = vadd.f32 0.0, %v1500
        %v1502 = vpop.f32.mrb[0].mxu0
        %1503 = vmatprep.mubr.f32.mxu0 0.0
        %1504 = vmatmul.mubr.f32.gmra.mrb[0].mxu0 %v1432
        %v1505 = vpop.f32.mrb[0].mxu0
        %v1506 = vadd.f32 0.0, %v1505
        %v1507 = vpop.f32.mrb[0].mxu0
        %1508 = vdwg.mxu0
        %v1509 = vadd.f32 %v301, %v1501
        %v1510 = vadd.f32 %v302, %v1506
        %1511 = vst [vmem:[%s284] sm:$0xff] %v1509
        %1512 = vst [vmem:[%s284 + $0x8] sm:$0xff] %v1510
        %s1513 = sand.u32 %s180, 1
        %s1514 = scalar_lea.sflag [#allocation6], %s1513
        %s1515 = sand.u32 %s180, 1
        %s1516 = smul.addr %s1515, 16
        %s1517 = scalar_lea.vmem [#allocation5], %s1516
        // Predicated region
        $region49: #{tpu_custom_call.1} parent=43 // pred_check
          %p1518 = pneg %p190
        $region50: #{tpu_custom_call.1} parent=43 // pred_check_branch
          %1520 = sbr.rel (%p1518) target = $region52
        $region51: #{tpu_custom_call.1} parent=43 // pred_region
          %s1521 = smul.u32 2, %s25
          %s1523 = ssub.s32 256, 256
          %1524 = vsyncadd %s1514, %s1523
          %s1525 = smul.addr %s24, 2
          %s1526 = sadd.s32 %s1521, %s1525
          %s1527 = smul.addr %s1526, 128
          %s1528 = scalar_lea.hbm %s6, %s1527
          %s1529 = sshll.u32 %s1517, 4
          %s1530 = int_to_ptr.vmem [resolvable:$true] %s1529
          %1535 = dma.vmem_to_hbm [thread:$0]  %s1530, 256, %s1528, %s1514, 128, 128, 8
        $region52: #{tpu_custom_call.1} parent=43 // pred_fallthru
          _
      $region44: #{tpu_custom_call.1} parent=5 // pred_fallthru
        _
      %p1536 = scmp.le.s32.totalorder 2, %s15
      // Predicated region
      $region53: #{tpu_custom_call.1} parent=5 // pred_check
        %p1537 = pneg %p1536
      $region54: #{tpu_custom_call.1} parent=5 // pred_check_branch
        %1539 = sbr.rel (%p1537) target = $region56
      $region55: #{tpu_custom_call.1} parent=5 // pred_region
        %s1540 = ssub.s32 %s15, 2
        // Predicated region
        $region57: #{tpu_custom_call.1} parent=55 // pred_check
          %p1541 = pneg %p196
        $region58: #{tpu_custom_call.1} parent=55 // pred_check_branch
          %1543 = sbr.rel (%p1541) target = $region60
        $region59: #{tpu_custom_call.1} parent=55 // pred_region
          %s1544 = sand.u32 %s181, 1
          %s1545 = scalar_lea.sflag [#allocation6], %s1544
          %s1546 = sand.u32 %s181, 1
          %s1547 = smul.addr %s1546, 16
          %s1548 = scalar_lea.vmem [#allocation5], %s1547
          %1549 = dma.done %s1545, 256
        $region60: #{tpu_custom_call.1} parent=55 // pred_fallthru
          _
      $region56: #{tpu_custom_call.1} parent=5 // pred_fallthru
        _
    $region6: #{tpu_custom_call.1} parent=1 // loop_footer
      %s19 = sadd.s32 1, %s15
    $region7: #{tpu_custom_call.1} parent=1 // loop_footer_branch
      %14 = sbr.rel target = $region3
    $region8: #{tpu_custom_call.1} parent=1 // loop_exit
      _
    %1550 = vsyncpa [#allocation6], 1
    %s1551 = scalar_lea.sflag [#allocation6], 1
    %1552 = vsyncpa %s1551, 1

</llo_original>
